<compile_context>
chip_gen: v7x
topology: tpu7x:2x2x1
jax: 0.10.0
libtpu: 0.0.40
codegen_flags: <defaults>
</compile_context>

<pallas_src>
import functools

import jax
import jax.numpy as jnp
from jax.experimental import pallas as pl
from jax.experimental.pallas import tpu as pltpu


def cbam_kernel(x_ref, w1t_ref, w2t_ref, wsa_ref, o_ref, *, k, H, W):
    x = x_ref[...]                                  # (Bt, C, HW) f32, lane-dense
    Bt, C, HW = x.shape
    pad = k // 2

    # ---------------- Channel attention ----------------
    avg_c = jnp.mean(x, axis=2)                     # (Bt, C)  == AdaptiveAvgPool2d(1)
    max_c = jnp.max(x, axis=2)                      # (Bt, C)  == AdaptiveMaxPool2d(1)
    v = jnp.concatenate([avg_c, max_c], axis=0)     # (2*Bt, C) -> single fused MLP pass

    w1t = w1t_ref[...]                              # (C, C//2)   conv1 weight, transposed
    w2t = w2t_ref[...]                              # (C//2, C)   conv2 weight, transposed
    if C >= 256:
        # Wide enough to be worth the MXU.
        h = jnp.maximum(jnp.dot(v, w1t, preferred_element_type=jnp.float32), 0.0)
        mlp = jnp.dot(h, w2t, preferred_element_type=jnp.float32)
    else:
        # Small C: keep the skinny matvecs on the VPU (fused, single pass).
        h = jnp.maximum(jnp.sum(v[:, :, None] * w1t[None, :, :], axis=1), 0.0)
        mlp = jnp.sum(h[:, :, None] * w2t[None, :, :], axis=1)

    ca = jax.nn.sigmoid(mlp[:Bt] + mlp[Bt:])        # (Bt, C)
    x1 = x * ca[:, :, None]                         # channel re-weighting

    # ---------------- Spatial attention ----------------
    avg_s = jnp.mean(x1, axis=1)                    # (Bt, HW) mean over channels
    max_s = jnp.max(x1, axis=1)                     # (Bt, HW) max over channels

    # Static row/col index maps (built once per step) for boundary masking.
    row = jax.lax.broadcasted_iota(jnp.int32, (Bt, H, W), 1).reshape(Bt, HW)
    col = jax.lax.broadcasted_iota(jnp.int32, (Bt, H, W), 2).reshape(Bt, HW)

    # kxk conv over the 2-channel (avg, max) map: static roll + mask, no padding.
    acc = jnp.zeros((Bt, HW), jnp.float32)
    for dy in range(k):
        for dx in range(k):
            oy, ox = dy - pad, dx - pad
            s = oy * W + ox
            a_sh = jnp.roll(avg_s, -s, axis=1) if s else avg_s
            m_sh = jnp.roll(max_s, -s, axis=1) if s else max_s
            w_a = wsa_ref[dy * k + dx]              # channel 0 (avg) weight, SMEM scalar
            w_m = wsa_ref[k * k + dy * k + dx]      # channel 1 (max) weight, SMEM scalar
            valid = ((row + oy >= 0) & (row + oy < H)
                     & (col + ox >= 0) & (col + ox < W))
            acc = acc + jnp.where(valid, w_a * a_sh + w_m * m_sh, 0.0)

    sa = jax.nn.sigmoid(acc)                        # (Bt, HW)

    # Dropout2d(p=0.0) is the identity (module default), so nothing to do here.
    o_ref[...] = x1 * sa[:, None, :]                # spatial re-weighting


def cbam_pallas(x, w1, w2, w_sa, *, k, block_batch=None):
    N, C, H, W = x.shape
    HW = H * W

    # Lane-dense view of the feature map (free for contiguous NCHW).
    xf = x.reshape(N, C, HW)
    w1t = jnp.transpose(w1)                         # (C, C//2)
    w2t = jnp.transpose(w2)                         # (C//2, C)
    wsa_flat = w_sa.reshape(-1).astype(jnp.float32)  # (2*k*k,) -> 1-D SMEM

    # Pick a batch tile: target ~2 MiB blocks, but keep >=2 grid steps when
    # possible so v7x's two TensorCores both get work on the parallel axis.
    bytes_per_n = C * HW * 4
    if block_batch is None:
        target = 2 << 20
        bt = max(1, min(N, target // max(bytes_per_n, 1)))
        if N >= 2:
            bt = min(bt, max(1, N // 2))
    else:
        bt = max(1, min(N, block_batch))
    while N % bt:                                   # keep blocks evenly dividing N
        bt -= 1

    grid = (N // bt,)
    block_bytes = bt * bytes_per_n
    # 2x in + 2x out double-buffered blocks + in-kernel value temps + margin.
    vmem_limit = int(min(64 << 20, max(8 * block_bytes + (4 << 20), 16 << 20)))

    out = pl.pallas_call(
        functools.partial(cbam_kernel, k=k, H=H, W=W),
        out_shape=jax.ShapeDtypeStruct((N, C, HW), jnp.float32),
        grid=grid,
        in_specs=[
            pl.BlockSpec((bt, C, HW), lambda i: (i, 0, 0)),
            pl.BlockSpec((C, C // 2), lambda i: (0, 0)),
            pl.BlockSpec((C // 2, C), lambda i: (0, 0)),
            pl.BlockSpec(memory_space=pltpu.MemorySpace.SMEM),  # (2*k*k,) conv weight
        ],
        out_specs=pl.BlockSpec((bt, C, HW), lambda i: (i, 0, 0)),
        compiler_params=pltpu.CompilerParams(
            dimension_semantics=("parallel",),
            vmem_limit_bytes=vmem_limit,
        ),
    )(xf, w1t, w2t, wsa_flat)
    return out.reshape(N, C, H, W)


def cbam_ref(x, w1, w2, w_sa, *, k):
    """Pure-JAX reference matching the PyTorch forward semantics."""
    avg_c = jnp.mean(x, axis=(2, 3), keepdims=True)
    max_c = jnp.max(x, axis=(2, 3), keepdims=True)

    def mlp(v):
        h = jnp.einsum("oc,ncij->noij", w1, v)
        h = jnp.maximum(h, 0.0)
        return jnp.einsum("oc,ncij->noij", w2, h)

    ca = jax.nn.sigmoid(mlp(avg_c) + mlp(max_c))
    x1 = ca * x

    avg_s = jnp.mean(x1, axis=1, keepdims=True)
    max_s = jnp.max(x1, axis=1, keepdims=True)
    sp = jnp.concatenate([avg_s, max_s], axis=1)
    conv = jax.lax.conv_general_dilated(
        sp, w_sa[None], (1, 1), [(k // 2, k // 2)] * 2,
        dimension_numbers=("NCHW", "OIHW", "NCHW"))
    sa = jax.nn.sigmoid(conv)
    return sa * x1


if __name__ == "__main__":
    N, C, H, W = 2, 4, 16, 16
    k = 3  # sa_kernel_size

    key = jax.random.PRNGKey(0)
    kx, k1, k2, k3 = jax.random.split(key, 4)

    x = jax.random.normal(kx, (N, C, H, W), dtype=jnp.float32)
    # Weight shapes from the module's __init__:
    #   sharedMLP conv1: (C//2, C, 1, 1) -> stored as (C//2, C)
    #   sharedMLP conv2: (C, C//2, 1, 1) -> stored as (C, C//2)
    #   spatial conv:    (1, 2, k, k)    -> stored as (2, k, k)
    w1 = 0.3 * jax.random.normal(k1, (C // 2, C), dtype=jnp.float32)
    w2 = 0.3 * jax.random.normal(k2, (C, C // 2), dtype=jnp.float32)
    w_sa = 0.3 * jax.random.normal(k3, (2, k, k), dtype=jnp.float32)

    out = cbam_pallas(x, w1, w2, w_sa, k=k)
    out = jax.block_until_ready(out)

    ref = cbam_ref(x, w1, w2, w_sa, k=k)
    assert out.shape == (N, C, H, W)
    assert jnp.allclose(out, ref, rtol=1e-5, atol=1e-5), "mismatch vs reference"

    print("KERNEL_OK")
</pallas_src>

<mosaic_0001>
module attributes {stable_mosaic.version = 11 : i64} {
  func.func @cbam_kernel(%arg0: i32, %arg1: memref<1x4x256xf32, #tpu.memory_space<vmem>>, %arg2: memref<4x2xf32, #tpu.memory_space<vmem>>, %arg3: memref<2x4xf32, #tpu.memory_space<vmem>>, %arg4: memref<18xf32, #tpu.memory_space<smem>>, %arg5: memref<1x4x256xf32, #tpu.memory_space<vmem>>) attributes {dimension_semantics = [#tpu.dimension_semantics<parallel>], iteration_bounds = array<i64: 2>, scalar_prefetch = 0 : i64, scratch_operands = 0 : i64, tpu.core_type = #tpu.core_type<tc>, window_params = [{transform_indices = @transform_0, window_bounds = array<i64: 1, 4, 256>}, {pipeline_mode = #tpu.pipeline_mode<synchronous>, transform_indices = @transform_1, window_bounds = array<i64: 4, 2>}, {pipeline_mode = #tpu.pipeline_mode<synchronous>, transform_indices = @transform_2, window_bounds = array<i64: 2, 4>}, {transform_indices = @transform_3, window_bounds = array<i64: 18>}, {transform_indices = @transform_4, window_bounds = array<i64: 1, 4, 256>}]} {
    %c0 = arith.constant 0 : index
    %c0_0 = arith.constant 0 : index
    %c0_1 = arith.constant 0 : index
    %0 = vector.load %arg1[%c0, %c0_0, %c0_1] : memref<1x4x256xf32, #tpu.memory_space<vmem>>, vector<1x4x256xf32>
    %cst = arith.constant dense<0.000000e+00> : vector<1x4xf32>
    %1 = vector.multi_reduction <add>, %0, %cst [2] : vector<1x4x256xf32> to vector<1x4xf32>
    %cst_2 = arith.constant 2.560000e+02 : f32
    %2 = vector.broadcast %cst_2 : f32 to vector<1x4xf32>
    %3 = arith.divf %1, %2 : vector<1x4xf32>
    %cst_3 = arith.constant dense<0xFF800000> : vector<1x4xf32>
    %4 = vector.multi_reduction <maximumf>, %0, %cst_3 [2] : vector<1x4x256xf32> to vector<1x4xf32>
    %5 = tpu.concatenate %3, %4 in 0 : vector<1x4xf32>, vector<1x4xf32> -> vector<2x4xf32>
    %c0_4 = arith.constant 0 : index
    %c0_5 = arith.constant 0 : index
    %6 = vector.load %arg2[%c0_4, %c0_5] : memref<4x2xf32, #tpu.memory_space<vmem>>, vector<4x2xf32>
    %c0_6 = arith.constant 0 : index
    %c0_7 = arith.constant 0 : index
    %7 = vector.load %arg3[%c0_6, %c0_7] : memref<2x4xf32, #tpu.memory_space<vmem>>, vector<2x4xf32>
    %8 = vector.shape_cast %5 : vector<2x4xf32> to vector<2x4x1xf32>
    %9 = vector.shape_cast %6 : vector<4x2xf32> to vector<1x4x2xf32>
    %10 = vector.broadcast %8 : vector<2x4x1xf32> to vector<2x4x2xf32>
    %11 = vector.broadcast %9 : vector<1x4x2xf32> to vector<2x4x2xf32>
    %12 = arith.mulf %10, %11 : vector<2x4x2xf32>
    %cst_8 = arith.constant dense<0.000000e+00> : vector<2x2xf32>
    %13 = vector.multi_reduction <add>, %12, %cst_8 [1] : vector<2x4x2xf32> to vector<2x2xf32>
    %cst_9 = arith.constant 0.000000e+00 : f32
    %14 = vector.broadcast %cst_9 : f32 to vector<2x2xf32>
    %15 = arith.maximumf %13, %14 : vector<2x2xf32>
    %16 = vector.shape_cast %15 : vector<2x2xf32> to vector<2x2x1xf32>
    %17 = vector.shape_cast %7 : vector<2x4xf32> to vector<1x2x4xf32>
    %18 = vector.broadcast %16 : vector<2x2x1xf32> to vector<2x2x4xf32>
    %19 = vector.broadcast %17 : vector<1x2x4xf32> to vector<2x2x4xf32>
    %20 = arith.mulf %18, %19 : vector<2x2x4xf32>
    %cst_10 = arith.constant dense<0.000000e+00> : vector<2x4xf32>
    %21 = vector.multi_reduction <add>, %20, %cst_10 [1] : vector<2x2x4xf32> to vector<2x4xf32>
    %22 = vector.extract_strided_slice %21 {offsets = [0, 0], sizes = [1, 4], strides = [1, 1]} : vector<2x4xf32> to vector<1x4xf32>
    %23 = vector.extract_strided_slice %21 {offsets = [1, 0], sizes = [1, 4], strides = [1, 1]} : vector<2x4xf32> to vector<1x4xf32>
    %24 = arith.addf %22, %23 : vector<1x4xf32>
    %25 = arith.negf %24 : vector<1x4xf32>
    %26 = math.exp %25 : vector<1x4xf32>
    %cst_11 = arith.constant 1.000000e+00 : f32
    %27 = vector.broadcast %cst_11 : f32 to vector<1x4xf32>
    %28 = arith.addf %27, %26 : vector<1x4xf32>
    %29 = arith.divf %27, %28 : vector<1x4xf32>
    %30 = vector.shape_cast %29 : vector<1x4xf32> to vector<1x4x1xf32>
    %31 = vector.broadcast %30 : vector<1x4x1xf32> to vector<1x4x256xf32>
    %32 = arith.mulf %0, %31 : vector<1x4x256xf32>
    %cst_12 = arith.constant dense<0.000000e+00> : vector<1x256xf32>
    %33 = vector.multi_reduction <add>, %32, %cst_12 [1] : vector<1x4x256xf32> to vector<1x256xf32>
    %cst_13 = arith.constant 4.000000e+00 : f32
    %34 = vector.broadcast %cst_13 : f32 to vector<1x256xf32>
    %35 = arith.divf %33, %34 : vector<1x256xf32>
    %cst_14 = arith.constant dense<0xFF800000> : vector<1x256xf32>
    %36 = vector.multi_reduction <maximumf>, %32, %cst_14 [1] : vector<1x4x256xf32> to vector<1x256xf32>
    %37 = tpu.iota {dimensions = array<i32: 1>} : vector<1x16x16xi32>
    %38 = vector.shape_cast %37 : vector<1x16x16xi32> to vector<1x256xi32>
    %39 = tpu.iota {dimensions = array<i32: 2>} : vector<1x16x16xi32>
    %40 = vector.shape_cast %39 : vector<1x16x16xi32> to vector<1x256xi32>
    %cst_15 = arith.constant 0.000000e+00 : f32
    %41 = vector.broadcast %cst_15 : f32 to vector<1x256xf32>
    %42 = vector.extract_strided_slice %35 {offsets = [0, 239], sizes = [1, 17], strides = [1, 1]} : vector<1x256xf32> to vector<1x17xf32>
    %43 = vector.extract_strided_slice %35 {offsets = [0, 0], sizes = [1, 239], strides = [1, 1]} : vector<1x256xf32> to vector<1x239xf32>
    %44 = tpu.concatenate %42, %43 in 1 : vector<1x17xf32>, vector<1x239xf32> -> vector<1x256xf32>
    %45 = vector.extract_strided_slice %36 {offsets = [0, 239], sizes = [1, 17], strides = [1, 1]} : vector<1x256xf32> to vector<1x17xf32>
    %46 = vector.extract_strided_slice %36 {offsets = [0, 0], sizes = [1, 239], strides = [1, 1]} : vector<1x256xf32> to vector<1x239xf32>
    %47 = tpu.concatenate %45, %46 in 1 : vector<1x17xf32>, vector<1x239xf32> -> vector<1x256xf32>
    %c0_16 = arith.constant 0 : index
    %48 = memref.load %arg4[%c0_16] : memref<18xf32, #tpu.memory_space<smem>>
    %c9 = arith.constant 9 : index
    %49 = memref.load %arg4[%c9] : memref<18xf32, #tpu.memory_space<smem>>
    %c-1_i32 = arith.constant -1 : i32
    %50 = vector.broadcast %c-1_i32 : i32 to vector<1x256xi32>
    %51 = arith.addi %38, %50 : vector<1x256xi32>
    %c0_i32 = arith.constant 0 : i32
    %52 = vector.broadcast %c0_i32 : i32 to vector<1x256xi32>
    %53 = arith.cmpi sge, %51, %52 : vector<1x256xi32>
    %c-1_i32_17 = arith.constant -1 : i32
    %54 = vector.broadcast %c-1_i32_17 : i32 to vector<1x256xi32>
    %55 = arith.addi %38, %54 : vector<1x256xi32>
    %c16_i32 = arith.constant 16 : i32
    %56 = vector.broadcast %c16_i32 : i32 to vector<1x256xi32>
    %57 = arith.cmpi slt, %55, %56 : vector<1x256xi32>
    %58 = arith.andi %53, %57 : vector<1x256xi1>
    %c-1_i32_18 = arith.constant -1 : i32
    %59 = vector.broadcast %c-1_i32_18 : i32 to vector<1x256xi32>
    %60 = arith.addi %40, %59 : vector<1x256xi32>
    %c0_i32_19 = arith.constant 0 : i32
    %61 = vector.broadcast %c0_i32_19 : i32 to vector<1x256xi32>
    %62 = arith.cmpi sge, %60, %61 : vector<1x256xi32>
    %63 = arith.andi %58, %62 : vector<1x256xi1>
    %c-1_i32_20 = arith.constant -1 : i32
    %64 = vector.broadcast %c-1_i32_20 : i32 to vector<1x256xi32>
    %65 = arith.addi %40, %64 : vector<1x256xi32>
    %c16_i32_21 = arith.constant 16 : i32
    %66 = vector.broadcast %c16_i32_21 : i32 to vector<1x256xi32>
    %67 = arith.cmpi slt, %65, %66 : vector<1x256xi32>
    %68 = arith.andi %63, %67 : vector<1x256xi1>
    %69 = vector.broadcast %48 : f32 to vector<1x256xf32>
    %70 = arith.mulf %69, %44 : vector<1x256xf32>
    %71 = vector.broadcast %49 : f32 to vector<1x256xf32>
    %72 = arith.mulf %71, %47 : vector<1x256xf32>
    %73 = arith.addf %70, %72 : vector<1x256xf32>
    %cst_22 = arith.constant 0.000000e+00 : f32
    %74 = vector.broadcast %cst_22 : f32 to vector<1x256xf32>
    %75 = arith.select %68, %73, %74 : vector<1x256xi1>, vector<1x256xf32>
    %76 = arith.addf %41, %75 : vector<1x256xf32>
    %77 = vector.extract_strided_slice %35 {offsets = [0, 240], sizes = [1, 16], strides = [1, 1]} : vector<1x256xf32> to vector<1x16xf32>
    %78 = vector.extract_strided_slice %35 {offsets = [0, 0], sizes = [1, 240], strides = [1, 1]} : vector<1x256xf32> to vector<1x240xf32>
    %79 = tpu.concatenate %77, %78 in 1 : vector<1x16xf32>, vector<1x240xf32> -> vector<1x256xf32>
    %80 = vector.extract_strided_slice %36 {offsets = [0, 240], sizes = [1, 16], strides = [1, 1]} : vector<1x256xf32> to vector<1x16xf32>
    %81 = vector.extract_strided_slice %36 {offsets = [0, 0], sizes = [1, 240], strides = [1, 1]} : vector<1x256xf32> to vector<1x240xf32>
    %82 = tpu.concatenate %80, %81 in 1 : vector<1x16xf32>, vector<1x240xf32> -> vector<1x256xf32>
    %c1 = arith.constant 1 : index
    %83 = memref.load %arg4[%c1] : memref<18xf32, #tpu.memory_space<smem>>
    %c10 = arith.constant 10 : index
    %84 = memref.load %arg4[%c10] : memref<18xf32, #tpu.memory_space<smem>>
    %c-1_i32_23 = arith.constant -1 : i32
    %85 = vector.broadcast %c-1_i32_23 : i32 to vector<1x256xi32>
    %86 = arith.addi %38, %85 : vector<1x256xi32>
    %c0_i32_24 = arith.constant 0 : i32
    %87 = vector.broadcast %c0_i32_24 : i32 to vector<1x256xi32>
    %88 = arith.cmpi sge, %86, %87 : vector<1x256xi32>
    %c-1_i32_25 = arith.constant -1 : i32
    %89 = vector.broadcast %c-1_i32_25 : i32 to vector<1x256xi32>
    %90 = arith.addi %38, %89 : vector<1x256xi32>
    %c16_i32_26 = arith.constant 16 : i32
    %91 = vector.broadcast %c16_i32_26 : i32 to vector<1x256xi32>
    %92 = arith.cmpi slt, %90, %91 : vector<1x256xi32>
    %93 = arith.andi %88, %92 : vector<1x256xi1>
    %c0_i32_27 = arith.constant 0 : i32
    %94 = vector.broadcast %c0_i32_27 : i32 to vector<1x256xi32>
    %95 = arith.addi %40, %94 : vector<1x256xi32>
    %c0_i32_28 = arith.constant 0 : i32
    %96 = vector.broadcast %c0_i32_28 : i32 to vector<1x256xi32>
    %97 = arith.cmpi sge, %95, %96 : vector<1x256xi32>
    %98 = arith.andi %93, %97 : vector<1x256xi1>
    %c0_i32_29 = arith.constant 0 : i32
    %99 = vector.broadcast %c0_i32_29 : i32 to vector<1x256xi32>
    %100 = arith.addi %40, %99 : vector<1x256xi32>
    %c16_i32_30 = arith.constant 16 : i32
    %101 = vector.broadcast %c16_i32_30 : i32 to vector<1x256xi32>
    %102 = arith.cmpi slt, %100, %101 : vector<1x256xi32>
    %103 = arith.andi %98, %102 : vector<1x256xi1>
    %104 = vector.broadcast %83 : f32 to vector<1x256xf32>
    %105 = arith.mulf %104, %79 : vector<1x256xf32>
    %106 = vector.broadcast %84 : f32 to vector<1x256xf32>
    %107 = arith.mulf %106, %82 : vector<1x256xf32>
    %108 = arith.addf %105, %107 : vector<1x256xf32>
    %cst_31 = arith.constant 0.000000e+00 : f32
    %109 = vector.broadcast %cst_31 : f32 to vector<1x256xf32>
    %110 = arith.select %103, %108, %109 : vector<1x256xi1>, vector<1x256xf32>
    %111 = arith.addf %76, %110 : vector<1x256xf32>
    %112 = vector.extract_strided_slice %35 {offsets = [0, 241], sizes = [1, 15], strides = [1, 1]} : vector<1x256xf32> to vector<1x15xf32>
    %113 = vector.extract_strided_slice %35 {offsets = [0, 0], sizes = [1, 241], strides = [1, 1]} : vector<1x256xf32> to vector<1x241xf32>
    %114 = tpu.concatenate %112, %113 in 1 : vector<1x15xf32>, vector<1x241xf32> -> vector<1x256xf32>
    %115 = vector.extract_strided_slice %36 {offsets = [0, 241], sizes = [1, 15], strides = [1, 1]} : vector<1x256xf32> to vector<1x15xf32>
    %116 = vector.extract_strided_slice %36 {offsets = [0, 0], sizes = [1, 241], strides = [1, 1]} : vector<1x256xf32> to vector<1x241xf32>
    %117 = tpu.concatenate %115, %116 in 1 : vector<1x15xf32>, vector<1x241xf32> -> vector<1x256xf32>
    %c2 = arith.constant 2 : index
    %118 = memref.load %arg4[%c2] : memref<18xf32, #tpu.memory_space<smem>>
    %c11 = arith.constant 11 : index
    %119 = memref.load %arg4[%c11] : memref<18xf32, #tpu.memory_space<smem>>
    %c-1_i32_32 = arith.constant -1 : i32
    %120 = vector.broadcast %c-1_i32_32 : i32 to vector<1x256xi32>
    %121 = arith.addi %38, %120 : vector<1x256xi32>
    %c0_i32_33 = arith.constant 0 : i32
    %122 = vector.broadcast %c0_i32_33 : i32 to vector<1x256xi32>
    %123 = arith.cmpi sge, %121, %122 : vector<1x256xi32>
    %c-1_i32_34 = arith.constant -1 : i32
    %124 = vector.broadcast %c-1_i32_34 : i32 to vector<1x256xi32>
    %125 = arith.addi %38, %124 : vector<1x256xi32>
    %c16_i32_35 = arith.constant 16 : i32
    %126 = vector.broadcast %c16_i32_35 : i32 to vector<1x256xi32>
    %127 = arith.cmpi slt, %125, %126 : vector<1x256xi32>
    %128 = arith.andi %123, %127 : vector<1x256xi1>
    %c1_i32 = arith.constant 1 : i32
    %129 = vector.broadcast %c1_i32 : i32 to vector<1x256xi32>
    %130 = arith.addi %40, %129 : vector<1x256xi32>
    %c0_i32_36 = arith.constant 0 : i32
    %131 = vector.broadcast %c0_i32_36 : i32 to vector<1x256xi32>
    %132 = arith.cmpi sge, %130, %131 : vector<1x256xi32>
    %133 = arith.andi %128, %132 : vector<1x256xi1>
    %c1_i32_37 = arith.constant 1 : i32
    %134 = vector.broadcast %c1_i32_37 : i32 to vector<1x256xi32>
    %135 = arith.addi %40, %134 : vector<1x256xi32>
    %c16_i32_38 = arith.constant 16 : i32
    %136 = vector.broadcast %c16_i32_38 : i32 to vector<1x256xi32>
    %137 = arith.cmpi slt, %135, %136 : vector<1x256xi32>
    %138 = arith.andi %133, %137 : vector<1x256xi1>
    %139 = vector.broadcast %118 : f32 to vector<1x256xf32>
    %140 = arith.mulf %139, %114 : vector<1x256xf32>
    %141 = vector.broadcast %119 : f32 to vector<1x256xf32>
    %142 = arith.mulf %141, %117 : vector<1x256xf32>
    %143 = arith.addf %140, %142 : vector<1x256xf32>
    %cst_39 = arith.constant 0.000000e+00 : f32
    %144 = vector.broadcast %cst_39 : f32 to vector<1x256xf32>
    %145 = arith.select %138, %143, %144 : vector<1x256xi1>, vector<1x256xf32>
    %146 = arith.addf %111, %145 : vector<1x256xf32>
    %147 = vector.extract_strided_slice %35 {offsets = [0, 255], sizes = [1, 1], strides = [1, 1]} : vector<1x256xf32> to vector<1x1xf32>
    %148 = vector.extract_strided_slice %35 {offsets = [0, 0], sizes = [1, 255], strides = [1, 1]} : vector<1x256xf32> to vector<1x255xf32>
    %149 = tpu.concatenate %147, %148 in 1 : vector<1x1xf32>, vector<1x255xf32> -> vector<1x256xf32>
    %150 = vector.extract_strided_slice %36 {offsets = [0, 255], sizes = [1, 1], strides = [1, 1]} : vector<1x256xf32> to vector<1x1xf32>
    %151 = vector.extract_strided_slice %36 {offsets = [0, 0], sizes = [1, 255], strides = [1, 1]} : vector<1x256xf32> to vector<1x255xf32>
    %152 = tpu.concatenate %150, %151 in 1 : vector<1x1xf32>, vector<1x255xf32> -> vector<1x256xf32>
    %c3 = arith.constant 3 : index
    %153 = memref.load %arg4[%c3] : memref<18xf32, #tpu.memory_space<smem>>
    %c12 = arith.constant 12 : index
    %154 = memref.load %arg4[%c12] : memref<18xf32, #tpu.memory_space<smem>>
    %c0_i32_40 = arith.constant 0 : i32
    %155 = vector.broadcast %c0_i32_40 : i32 to vector<1x256xi32>
    %156 = arith.addi %38, %155 : vector<1x256xi32>
    %c0_i32_41 = arith.constant 0 : i32
    %157 = vector.broadcast %c0_i32_41 : i32 to vector<1x256xi32>
    %158 = arith.cmpi sge, %156, %157 : vector<1x256xi32>
    %c0_i32_42 = arith.constant 0 : i32
    %159 = vector.broadcast %c0_i32_42 : i32 to vector<1x256xi32>
    %160 = arith.addi %38, %159 : vector<1x256xi32>
    %c16_i32_43 = arith.constant 16 : i32
    %161 = vector.broadcast %c16_i32_43 : i32 to vector<1x256xi32>
    %162 = arith.cmpi slt, %160, %161 : vector<1x256xi32>
    %163 = arith.andi %158, %162 : vector<1x256xi1>
    %c-1_i32_44 = arith.constant -1 : i32
    %164 = vector.broadcast %c-1_i32_44 : i32 to vector<1x256xi32>
    %165 = arith.addi %40, %164 : vector<1x256xi32>
    %c0_i32_45 = arith.constant 0 : i32
    %166 = vector.broadcast %c0_i32_45 : i32 to vector<1x256xi32>
    %167 = arith.cmpi sge, %165, %166 : vector<1x256xi32>
    %168 = arith.andi %163, %167 : vector<1x256xi1>
    %c-1_i32_46 = arith.constant -1 : i32
    %169 = vector.broadcast %c-1_i32_46 : i32 to vector<1x256xi32>
    %170 = arith.addi %40, %169 : vector<1x256xi32>
    %c16_i32_47 = arith.constant 16 : i32
    %171 = vector.broadcast %c16_i32_47 : i32 to vector<1x256xi32>
    %172 = arith.cmpi slt, %170, %171 : vector<1x256xi32>
    %173 = arith.andi %168, %172 : vector<1x256xi1>
    %174 = vector.broadcast %153 : f32 to vector<1x256xf32>
    %175 = arith.mulf %174, %149 : vector<1x256xf32>
    %176 = vector.broadcast %154 : f32 to vector<1x256xf32>
    %177 = arith.mulf %176, %152 : vector<1x256xf32>
    %178 = arith.addf %175, %177 : vector<1x256xf32>
    %cst_48 = arith.constant 0.000000e+00 : f32
    %179 = vector.broadcast %cst_48 : f32 to vector<1x256xf32>
    %180 = arith.select %173, %178, %179 : vector<1x256xi1>, vector<1x256xf32>
    %181 = arith.addf %146, %180 : vector<1x256xf32>
    %c4 = arith.constant 4 : index
    %182 = memref.load %arg4[%c4] : memref<18xf32, #tpu.memory_space<smem>>
    %c13 = arith.constant 13 : index
    %183 = memref.load %arg4[%c13] : memref<18xf32, #tpu.memory_space<smem>>
    %c0_i32_49 = arith.constant 0 : i32
    %184 = vector.broadcast %c0_i32_49 : i32 to vector<1x256xi32>
    %185 = arith.addi %38, %184 : vector<1x256xi32>
    %c0_i32_50 = arith.constant 0 : i32
    %186 = vector.broadcast %c0_i32_50 : i32 to vector<1x256xi32>
    %187 = arith.cmpi sge, %185, %186 : vector<1x256xi32>
    %c0_i32_51 = arith.constant 0 : i32
    %188 = vector.broadcast %c0_i32_51 : i32 to vector<1x256xi32>
    %189 = arith.addi %38, %188 : vector<1x256xi32>
    %c16_i32_52 = arith.constant 16 : i32
    %190 = vector.broadcast %c16_i32_52 : i32 to vector<1x256xi32>
    %191 = arith.cmpi slt, %189, %190 : vector<1x256xi32>
    %192 = arith.andi %187, %191 : vector<1x256xi1>
    %c0_i32_53 = arith.constant 0 : i32
    %193 = vector.broadcast %c0_i32_53 : i32 to vector<1x256xi32>
    %194 = arith.addi %40, %193 : vector<1x256xi32>
    %c0_i32_54 = arith.constant 0 : i32
    %195 = vector.broadcast %c0_i32_54 : i32 to vector<1x256xi32>
    %196 = arith.cmpi sge, %194, %195 : vector<1x256xi32>
    %197 = arith.andi %192, %196 : vector<1x256xi1>
    %c0_i32_55 = arith.constant 0 : i32
    %198 = vector.broadcast %c0_i32_55 : i32 to vector<1x256xi32>
    %199 = arith.addi %40, %198 : vector<1x256xi32>
    %c16_i32_56 = arith.constant 16 : i32
    %200 = vector.broadcast %c16_i32_56 : i32 to vector<1x256xi32>
    %201 = arith.cmpi slt, %199, %200 : vector<1x256xi32>
    %202 = arith.andi %197, %201 : vector<1x256xi1>
    %203 = vector.broadcast %182 : f32 to vector<1x256xf32>
    %204 = arith.mulf %203, %35 : vector<1x256xf32>
    %205 = vector.broadcast %183 : f32 to vector<1x256xf32>
    %206 = arith.mulf %205, %36 : vector<1x256xf32>
    %207 = arith.addf %204, %206 : vector<1x256xf32>
    %cst_57 = arith.constant 0.000000e+00 : f32
    %208 = vector.broadcast %cst_57 : f32 to vector<1x256xf32>
    %209 = arith.select %202, %207, %208 : vector<1x256xi1>, vector<1x256xf32>
    %210 = arith.addf %181, %209 : vector<1x256xf32>
    %211 = vector.extract_strided_slice %35 {offsets = [0, 1], sizes = [1, 255], strides = [1, 1]} : vector<1x256xf32> to vector<1x255xf32>
    %212 = vector.extract_strided_slice %35 {offsets = [0, 0], sizes = [1, 1], strides = [1, 1]} : vector<1x256xf32> to vector<1x1xf32>
    %213 = tpu.concatenate %211, %212 in 1 : vector<1x255xf32>, vector<1x1xf32> -> vector<1x256xf32>
    %214 = vector.extract_strided_slice %36 {offsets = [0, 1], sizes = [1, 255], strides = [1, 1]} : vector<1x256xf32> to vector<1x255xf32>
    %215 = vector.extract_strided_slice %36 {offsets = [0, 0], sizes = [1, 1], strides = [1, 1]} : vector<1x256xf32> to vector<1x1xf32>
    %216 = tpu.concatenate %214, %215 in 1 : vector<1x255xf32>, vector<1x1xf32> -> vector<1x256xf32>
    %c5 = arith.constant 5 : index
    %217 = memref.load %arg4[%c5] : memref<18xf32, #tpu.memory_space<smem>>
    %c14 = arith.constant 14 : index
    %218 = memref.load %arg4[%c14] : memref<18xf32, #tpu.memory_space<smem>>
    %c0_i32_58 = arith.constant 0 : i32
    %219 = vector.broadcast %c0_i32_58 : i32 to vector<1x256xi32>
    %220 = arith.addi %38, %219 : vector<1x256xi32>
    %c0_i32_59 = arith.constant 0 : i32
    %221 = vector.broadcast %c0_i32_59 : i32 to vector<1x256xi32>
    %222 = arith.cmpi sge, %220, %221 : vector<1x256xi32>
    %c0_i32_60 = arith.constant 0 : i32
    %223 = vector.broadcast %c0_i32_60 : i32 to vector<1x256xi32>
    %224 = arith.addi %38, %223 : vector<1x256xi32>
    %c16_i32_61 = arith.constant 16 : i32
    %225 = vector.broadcast %c16_i32_61 : i32 to vector<1x256xi32>
    %226 = arith.cmpi slt, %224, %225 : vector<1x256xi32>
    %227 = arith.andi %222, %226 : vector<1x256xi1>
    %c1_i32_62 = arith.constant 1 : i32
    %228 = vector.broadcast %c1_i32_62 : i32 to vector<1x256xi32>
    %229 = arith.addi %40, %228 : vector<1x256xi32>
    %c0_i32_63 = arith.constant 0 : i32
    %230 = vector.broadcast %c0_i32_63 : i32 to vector<1x256xi32>
    %231 = arith.cmpi sge, %229, %230 : vector<1x256xi32>
    %232 = arith.andi %227, %231 : vector<1x256xi1>
    %c1_i32_64 = arith.constant 1 : i32
    %233 = vector.broadcast %c1_i32_64 : i32 to vector<1x256xi32>
    %234 = arith.addi %40, %233 : vector<1x256xi32>
    %c16_i32_65 = arith.constant 16 : i32
    %235 = vector.broadcast %c16_i32_65 : i32 to vector<1x256xi32>
    %236 = arith.cmpi slt, %234, %235 : vector<1x256xi32>
    %237 = arith.andi %232, %236 : vector<1x256xi1>
    %238 = vector.broadcast %217 : f32 to vector<1x256xf32>
    %239 = arith.mulf %238, %213 : vector<1x256xf32>
    %240 = vector.broadcast %218 : f32 to vector<1x256xf32>
    %241 = arith.mulf %240, %216 : vector<1x256xf32>
    %242 = arith.addf %239, %241 : vector<1x256xf32>
    %cst_66 = arith.constant 0.000000e+00 : f32
    %243 = vector.broadcast %cst_66 : f32 to vector<1x256xf32>
    %244 = arith.select %237, %242, %243 : vector<1x256xi1>, vector<1x256xf32>
    %245 = arith.addf %210, %244 : vector<1x256xf32>
    %246 = vector.extract_strided_slice %35 {offsets = [0, 15], sizes = [1, 241], strides = [1, 1]} : vector<1x256xf32> to vector<1x241xf32>
    %247 = vector.extract_strided_slice %35 {offsets = [0, 0], sizes = [1, 15], strides = [1, 1]} : vector<1x256xf32> to vector<1x15xf32>
    %248 = tpu.concatenate %246, %247 in 1 : vector<1x241xf32>, vector<1x15xf32> -> vector<1x256xf32>
    %249 = vector.extract_strided_slice %36 {offsets = [0, 15], sizes = [1, 241], strides = [1, 1]} : vector<1x256xf32> to vector<1x241xf32>
    %250 = vector.extract_strided_slice %36 {offsets = [0, 0], sizes = [1, 15], strides = [1, 1]} : vector<1x256xf32> to vector<1x15xf32>
    %251 = tpu.concatenate %249, %250 in 1 : vector<1x241xf32>, vector<1x15xf32> -> vector<1x256xf32>
    %c6 = arith.constant 6 : index
    %252 = memref.load %arg4[%c6] : memref<18xf32, #tpu.memory_space<smem>>
    %c15 = arith.constant 15 : index
    %253 = memref.load %arg4[%c15] : memref<18xf32, #tpu.memory_space<smem>>
    %c1_i32_67 = arith.constant 1 : i32
    %254 = vector.broadcast %c1_i32_67 : i32 to vector<1x256xi32>
    %255 = arith.addi %38, %254 : vector<1x256xi32>
    %c0_i32_68 = arith.constant 0 : i32
    %256 = vector.broadcast %c0_i32_68 : i32 to vector<1x256xi32>
    %257 = arith.cmpi sge, %255, %256 : vector<1x256xi32>
    %c1_i32_69 = arith.constant 1 : i32
    %258 = vector.broadcast %c1_i32_69 : i32 to vector<1x256xi32>
    %259 = arith.addi %38, %258 : vector<1x256xi32>
    %c16_i32_70 = arith.constant 16 : i32
    %260 = vector.broadcast %c16_i32_70 : i32 to vector<1x256xi32>
    %261 = arith.cmpi slt, %259, %260 : vector<1x256xi32>
    %262 = arith.andi %257, %261 : vector<1x256xi1>
    %c-1_i32_71 = arith.constant -1 : i32
    %263 = vector.broadcast %c-1_i32_71 : i32 to vector<1x256xi32>
    %264 = arith.addi %40, %263 : vector<1x256xi32>
    %c0_i32_72 = arith.constant 0 : i32
    %265 = vector.broadcast %c0_i32_72 : i32 to vector<1x256xi32>
    %266 = arith.cmpi sge, %264, %265 : vector<1x256xi32>
    %267 = arith.andi %262, %266 : vector<1x256xi1>
    %c-1_i32_73 = arith.constant -1 : i32
    %268 = vector.broadcast %c-1_i32_73 : i32 to vector<1x256xi32>
    %269 = arith.addi %40, %268 : vector<1x256xi32>
    %c16_i32_74 = arith.constant 16 : i32
    %270 = vector.broadcast %c16_i32_74 : i32 to vector<1x256xi32>
    %271 = arith.cmpi slt, %269, %270 : vector<1x256xi32>
    %272 = arith.andi %267, %271 : vector<1x256xi1>
    %273 = vector.broadcast %252 : f32 to vector<1x256xf32>
    %274 = arith.mulf %273, %248 : vector<1x256xf32>
    %275 = vector.broadcast %253 : f32 to vector<1x256xf32>
    %276 = arith.mulf %275, %251 : vector<1x256xf32>
    %277 = arith.addf %274, %276 : vector<1x256xf32>
    %cst_75 = arith.constant 0.000000e+00 : f32
    %278 = vector.broadcast %cst_75 : f32 to vector<1x256xf32>
    %279 = arith.select %272, %277, %278 : vector<1x256xi1>, vector<1x256xf32>
    %280 = arith.addf %245, %279 : vector<1x256xf32>
    %281 = vector.extract_strided_slice %35 {offsets = [0, 16], sizes = [1, 240], strides = [1, 1]} : vector<1x256xf32> to vector<1x240xf32>
    %282 = vector.extract_strided_slice %35 {offsets = [0, 0], sizes = [1, 16], strides = [1, 1]} : vector<1x256xf32> to vector<1x16xf32>
    %283 = tpu.concatenate %281, %282 in 1 : vector<1x240xf32>, vector<1x16xf32> -> vector<1x256xf32>
    %284 = vector.extract_strided_slice %36 {offsets = [0, 16], sizes = [1, 240], strides = [1, 1]} : vector<1x256xf32> to vector<1x240xf32>
    %285 = vector.extract_strided_slice %36 {offsets = [0, 0], sizes = [1, 16], strides = [1, 1]} : vector<1x256xf32> to vector<1x16xf32>
    %286 = tpu.concatenate %284, %285 in 1 : vector<1x240xf32>, vector<1x16xf32> -> vector<1x256xf32>
    %c7 = arith.constant 7 : index
    %287 = memref.load %arg4[%c7] : memref<18xf32, #tpu.memory_space<smem>>
    %c16 = arith.constant 16 : index
    %288 = memref.load %arg4[%c16] : memref<18xf32, #tpu.memory_space<smem>>
    %c1_i32_76 = arith.constant 1 : i32
    %289 = vector.broadcast %c1_i32_76 : i32 to vector<1x256xi32>
    %290 = arith.addi %38, %289 : vector<1x256xi32>
    %c0_i32_77 = arith.constant 0 : i32
    %291 = vector.broadcast %c0_i32_77 : i32 to vector<1x256xi32>
    %292 = arith.cmpi sge, %290, %291 : vector<1x256xi32>
    %c1_i32_78 = arith.constant 1 : i32
    %293 = vector.broadcast %c1_i32_78 : i32 to vector<1x256xi32>
    %294 = arith.addi %38, %293 : vector<1x256xi32>
    %c16_i32_79 = arith.constant 16 : i32
    %295 = vector.broadcast %c16_i32_79 : i32 to vector<1x256xi32>
    %296 = arith.cmpi slt, %294, %295 : vector<1x256xi32>
    %297 = arith.andi %292, %296 : vector<1x256xi1>
    %c0_i32_80 = arith.constant 0 : i32
    %298 = vector.broadcast %c0_i32_80 : i32 to vector<1x256xi32>
    %299 = arith.addi %40, %298 : vector<1x256xi32>
    %c0_i32_81 = arith.constant 0 : i32
    %300 = vector.broadcast %c0_i32_81 : i32 to vector<1x256xi32>
    %301 = arith.cmpi sge, %299, %300 : vector<1x256xi32>
    %302 = arith.andi %297, %301 : vector<1x256xi1>
    %c0_i32_82 = arith.constant 0 : i32
    %303 = vector.broadcast %c0_i32_82 : i32 to vector<1x256xi32>
    %304 = arith.addi %40, %303 : vector<1x256xi32>
    %c16_i32_83 = arith.constant 16 : i32
    %305 = vector.broadcast %c16_i32_83 : i32 to vector<1x256xi32>
    %306 = arith.cmpi slt, %304, %305 : vector<1x256xi32>
    %307 = arith.andi %302, %306 : vector<1x256xi1>
    %308 = vector.broadcast %287 : f32 to vector<1x256xf32>
    %309 = arith.mulf %308, %283 : vector<1x256xf32>
    %310 = vector.broadcast %288 : f32 to vector<1x256xf32>
    %311 = arith.mulf %310, %286 : vector<1x256xf32>
    %312 = arith.addf %309, %311 : vector<1x256xf32>
    %cst_84 = arith.constant 0.000000e+00 : f32
    %313 = vector.broadcast %cst_84 : f32 to vector<1x256xf32>
    %314 = arith.select %307, %312, %313 : vector<1x256xi1>, vector<1x256xf32>
    %315 = arith.addf %280, %314 : vector<1x256xf32>
    %316 = vector.extract_strided_slice %35 {offsets = [0, 17], sizes = [1, 239], strides = [1, 1]} : vector<1x256xf32> to vector<1x239xf32>
    %317 = vector.extract_strided_slice %35 {offsets = [0, 0], sizes = [1, 17], strides = [1, 1]} : vector<1x256xf32> to vector<1x17xf32>
    %318 = tpu.concatenate %316, %317 in 1 : vector<1x239xf32>, vector<1x17xf32> -> vector<1x256xf32>
    %319 = vector.extract_strided_slice %36 {offsets = [0, 17], sizes = [1, 239], strides = [1, 1]} : vector<1x256xf32> to vector<1x239xf32>
    %320 = vector.extract_strided_slice %36 {offsets = [0, 0], sizes = [1, 17], strides = [1, 1]} : vector<1x256xf32> to vector<1x17xf32>
    %321 = tpu.concatenate %319, %320 in 1 : vector<1x239xf32>, vector<1x17xf32> -> vector<1x256xf32>
    %c8 = arith.constant 8 : index
    %322 = memref.load %arg4[%c8] : memref<18xf32, #tpu.memory_space<smem>>
    %c17 = arith.constant 17 : index
    %323 = memref.load %arg4[%c17] : memref<18xf32, #tpu.memory_space<smem>>
    %c1_i32_85 = arith.constant 1 : i32
    %324 = vector.broadcast %c1_i32_85 : i32 to vector<1x256xi32>
    %325 = arith.addi %38, %324 : vector<1x256xi32>
    %c0_i32_86 = arith.constant 0 : i32
    %326 = vector.broadcast %c0_i32_86 : i32 to vector<1x256xi32>
    %327 = arith.cmpi sge, %325, %326 : vector<1x256xi32>
    %c1_i32_87 = arith.constant 1 : i32
    %328 = vector.broadcast %c1_i32_87 : i32 to vector<1x256xi32>
    %329 = arith.addi %38, %328 : vector<1x256xi32>
    %c16_i32_88 = arith.constant 16 : i32
    %330 = vector.broadcast %c16_i32_88 : i32 to vector<1x256xi32>
    %331 = arith.cmpi slt, %329, %330 : vector<1x256xi32>
    %332 = arith.andi %327, %331 : vector<1x256xi1>
    %c1_i32_89 = arith.constant 1 : i32
    %333 = vector.broadcast %c1_i32_89 : i32 to vector<1x256xi32>
    %334 = arith.addi %40, %333 : vector<1x256xi32>
    %c0_i32_90 = arith.constant 0 : i32
    %335 = vector.broadcast %c0_i32_90 : i32 to vector<1x256xi32>
    %336 = arith.cmpi sge, %334, %335 : vector<1x256xi32>
    %337 = arith.andi %332, %336 : vector<1x256xi1>
    %c1_i32_91 = arith.constant 1 : i32
    %338 = vector.broadcast %c1_i32_91 : i32 to vector<1x256xi32>
    %339 = arith.addi %40, %338 : vector<1x256xi32>
    %c16_i32_92 = arith.constant 16 : i32
    %340 = vector.broadcast %c16_i32_92 : i32 to vector<1x256xi32>
    %341 = arith.cmpi slt, %339, %340 : vector<1x256xi32>
    %342 = arith.andi %337, %341 : vector<1x256xi1>
    %343 = vector.broadcast %322 : f32 to vector<1x256xf32>
    %344 = arith.mulf %343, %318 : vector<1x256xf32>
    %345 = vector.broadcast %323 : f32 to vector<1x256xf32>
    %346 = arith.mulf %345, %321 : vector<1x256xf32>
    %347 = arith.addf %344, %346 : vector<1x256xf32>
    %cst_93 = arith.constant 0.000000e+00 : f32
    %348 = vector.broadcast %cst_93 : f32 to vector<1x256xf32>
    %349 = arith.select %342, %347, %348 : vector<1x256xi1>, vector<1x256xf32>
    %350 = arith.addf %315, %349 : vector<1x256xf32>
    %351 = arith.negf %350 : vector<1x256xf32>
    %352 = math.exp %351 : vector<1x256xf32>
    %cst_94 = arith.constant 1.000000e+00 : f32
    %353 = vector.broadcast %cst_94 : f32 to vector<1x256xf32>
    %354 = arith.addf %353, %352 : vector<1x256xf32>
    %355 = arith.divf %353, %354 : vector<1x256xf32>
    %356 = vector.shape_cast %355 : vector<1x256xf32> to vector<1x1x256xf32>
    %357 = vector.broadcast %356 : vector<1x1x256xf32> to vector<1x4x256xf32>
    %358 = arith.mulf %32, %357 : vector<1x4x256xf32>
    %c0_95 = arith.constant 0 : index
    %c0_96 = arith.constant 0 : index
    %c0_97 = arith.constant 0 : index
    %359 = vector.load %arg5[%c0_95, %c0_96, %c0_97] : memref<1x4x256xf32, #tpu.memory_space<vmem>>, vector<1x4x256xf32>
    tpu.vector_store %arg5[%c0_95, %c0_96, %c0_97], %358 {strides = array<i32>} : memref<1x4x256xf32, #tpu.memory_space<vmem>>, vector<1x4x256xf32>,
    return
  }
  func.func @transform_0(%arg0: i32) -> (i32, i32, i32) {
    %c0_i32 = arith.constant 0 : i32
    %c0_i32_0 = arith.constant 0 : i32
    %c0_i32_1 = arith.constant 0 : i32
    return %arg0, %c0_i32, %c0_i32_0 : i32, i32, i32
  }
  func.func @transform_1(%arg0: i32) -> (i32, i32) {
    %c0_i32 = arith.constant 0 : i32
    %c0_i32_0 = arith.constant 0 : i32
    %c0_i32_1 = arith.constant 0 : i32
    return %c0_i32, %c0_i32_0 : i32, i32
  }
  func.func @transform_2(%arg0: i32) -> (i32, i32) {
    %c0_i32 = arith.constant 0 : i32
    %c0_i32_0 = arith.constant 0 : i32
    %c0_i32_1 = arith.constant 0 : i32
    return %c0_i32, %c0_i32_0 : i32, i32
  }
  func.func @transform_3(%arg0: i32) -> i32 {
    %c0_i32 = arith.constant 0 : i32
    %c0_i32_0 = arith.constant 0 : i32
    return %c0_i32 : i32
  }
  func.func @transform_4(%arg0: i32) -> (i32, i32, i32) {
    %c0_i32 = arith.constant 0 : i32
    %c0_i32_0 = arith.constant 0 : i32
    %c0_i32_1 = arith.constant 0 : i32
    return %arg0, %c0_i32, %c0_i32_0 : i32, i32, i32
  }
}

</mosaic_0001>

<llo_original>
// kernel: tpu_custom_call.1
$region0: #{tpu_custom_call.1}
  #allocation0 [shape = 'u32[]', space=smem, size = 0x4, offset = 0x4, fixed_abs, tag = 'smem constant byte address 0x4 - core index']
  #allocation1 [shape = 'u32[144,128]{1,0:T(1,128)}', space=vmem, size = 0x12000, scoped, tag = 'internal scratch']
  %s0 = inlined_call_operand.hbm [shape: f32[2,4,256], index: 0, kind: input, shape index: {}]
  %s1 = inlined_call_operand.vmem [shape: f32[4,2], index: 1, kind: input, shape index: {}]
  %s2 = inlined_call_operand.vmem [shape: f32[2,4], index: 2, kind: input, shape index: {}]
  %s3 = inlined_call_operand.vmem [shape: f32[18], index: 3, kind: input, shape index: {}]
  %s4 = inlined_call_operand.hbm [shape: f32[2,4,256], index: 4, kind: output, shape index: {}]
  %s5 = sld [smem:[#allocation0]]
  $region57: #{tpu_custom_call.1} parent=0
    _
  %s7 = ssub.s32 1, %s5
  %s8 = scalar_select 0, %s7, %s5
  $region1: #{tpu_custom_call.1} parent=0
    #allocation2 [shape = 'u8[8192]{0}', space=vmem, size = 0x2000, scoped, tag = 'input window, operand 0']
    #allocation3 [shape = 's32[2]{0}', space=sflag, size = 0x8, scoped, tag = 'scoped memory for tpu_custom_call.1']
    #allocation4 [shape = 's32[2]{0}', space=sflag, size = 0x8, scoped, tag = 'scoped memory for tpu_custom_call.1']
    #allocation5 [shape = 's32[2]{0}', space=sflag, size = 0x8, scoped, tag = 'scoped memory for tpu_custom_call.1']
    #allocation6 [shape = 'u8[512]{0}', space=smem, size = 0x200, scoped, tag = 'input window, operand 3, single buffered']
    #allocation7 [shape = 'u8[8192]{0}', space=vmem, size = 0x2000, scoped, tag = 'output window, operand 0']
    %9 = vsyncpa [#allocation3], 0
    %s10 = scalar_lea.sflag [#allocation3], 1
    %11 = vsyncpa %s10, 0
    %12 = vsyncpa [#allocation5], 0
    %13 = vsyncpa [#allocation4], 0
    %s14 = scalar_lea.sflag [#allocation4], 1
    %15 = vsyncpa %s14, 0
    loop: start=0, step=1, limit=4
    $region2: #{tpu_custom_call.1} parent=1 // loop_pre_header
      _
    $region3: #{tpu_custom_call.1} parent=1 // loop_header
      %s17 = sphi 0, %s21
      %p18 = scmp.ge.s32.totalorder %s17, 4
      %s27 = sphi 0, %s29
      %s30 = sphi 0, %s27
      %s31 = sphi 0, %s30
      %s47 = sphi 0, %s31
      %s51 = sphi 0, %s51
      %s53 = sphi 0, %s51
      %s54 = sphi 0, %s53
      %s68 = sphi 0, %s54
      %s72 = sphi 0, %s72
      %s74 = sphi 0, %s72
      %s75 = sphi 0, %s74
      %s89 = sphi 0, %s75
      %s93 = sphi 0, %s93
      %s95 = sphi 0, %s93
      %s96 = sphi 0, %s95
      %s110 = sphi 0, %s96
      %s116 = sphi 0, %s118
      %s119 = sphi 0, %s116
      %s120 = sphi 0, %s119
      %s136 = sphi 0, %s120
    $region4: #{tpu_custom_call.1} parent=1 // loop_header_branch
      %20 = sbr.rel (%p18) target = $region8
    $region5: #{tpu_custom_call.1} parent=1 // loop_body
      %s22 = ssub.s32 %s17, 1
      %s23 = ssub.s32 %s17, 2
      %s24 = sadd.s32 %s17, 1
      %s25 = ssub.s32 %s17, %s24
      %p26 = scmp.eq.s32.totalorder %s25, 0
      %s28 = sadd.s32 %s27, 1
      %s29 = scalar_select %p26, %s27, %s28
      %p32 = pneg %p26
      %p33 = scmp.eq.s32.totalorder %s17, 1
      %p34 = por %p32, %p33
      %p35 = scmp.ne.s32.totalorder %s27, %s30
      %p36 = scmp.eq.s32.totalorder %s17, 0
      %p37 = por %p35, %p36
      %p38 = scmp.ne.s32.totalorder %s27, %s30
      %p39 = scmp.eq.s32.totalorder %s22, 1
      %p40 = por %p38, %p39
      %p41 = scmp.ne.s32.totalorder %s30, %s31
      %p42 = scmp.eq.s32.totalorder %s22, 0
      %p43 = por %p41, %p42
      %p44 = scmp.ne.s32.totalorder %s30, %s31
      %p45 = scmp.eq.s32.totalorder %s23, 1
      %p46 = por %p44, %p45
      %p48 = scmp.ne.s32.totalorder %s31, %s47
      %p49 = scmp.eq.s32.totalorder %s23, 0
      %p50 = por %p48, %p49
      %s52 = sadd.s32 %s51, 1
      %p55 = scmp.eq.s32.totalorder %s17, 1
      %p56 = scmp.ne.s32.totalorder %s51, %s53
      %p57 = scmp.eq.s32.totalorder %s17, 0
      %p58 = por %p56, %p57
      %p59 = scmp.ne.s32.totalorder %s51, %s53
      %p60 = scmp.eq.s32.totalorder %s22, 1
      %p61 = por %p59, %p60
      %p62 = scmp.ne.s32.totalorder %s53, %s54
      %p63 = scmp.eq.s32.totalorder %s22, 0
      %p64 = por %p62, %p63
      %p65 = scmp.ne.s32.totalorder %s53, %s54
      %p66 = scmp.eq.s32.totalorder %s23, 1
      %p67 = por %p65, %p66
      %p69 = scmp.ne.s32.totalorder %s54, %s68
      %p70 = scmp.eq.s32.totalorder %s23, 0
      %p71 = por %p69, %p70
      %s73 = sadd.s32 %s72, 1
      %p76 = scmp.eq.s32.totalorder %s17, 1
      %p77 = scmp.ne.s32.totalorder %s72, %s74
      %p78 = scmp.eq.s32.totalorder %s17, 0
      %p79 = por %p77, %p78
      %p80 = scmp.ne.s32.totalorder %s72, %s74
      %p81 = scmp.eq.s32.totalorder %s22, 1
      %p82 = por %p80, %p81
      %p83 = scmp.ne.s32.totalorder %s74, %s75
      %p84 = scmp.eq.s32.totalorder %s22, 0
      %p85 = por %p83, %p84
      %p86 = scmp.ne.s32.totalorder %s74, %s75
      %p87 = scmp.eq.s32.totalorder %s23, 1
      %p88 = por %p86, %p87
      %p90 = scmp.ne.s32.totalorder %s75, %s89
      %p91 = scmp.eq.s32.totalorder %s23, 0
      %p92 = por %p90, %p91
      %s94 = sadd.s32 %s93, 1
      %p97 = scmp.eq.s32.totalorder %s17, 1
      %p98 = scmp.ne.s32.totalorder %s93, %s95
      %p99 = scmp.eq.s32.totalorder %s17, 0
      %p100 = por %p98, %p99
      %p101 = scmp.ne.s32.totalorder %s93, %s95
      %p102 = scmp.eq.s32.totalorder %s22, 1
      %p103 = por %p101, %p102
      %p104 = scmp.ne.s32.totalorder %s95, %s96
      %p105 = scmp.eq.s32.totalorder %s22, 0
      %p106 = por %p104, %p105
      %p107 = scmp.ne.s32.totalorder %s95, %s96
      %p108 = scmp.eq.s32.totalorder %s23, 1
      %p109 = por %p107, %p108
      %p111 = scmp.ne.s32.totalorder %s96, %s110
      %p112 = scmp.eq.s32.totalorder %s23, 0
      %p113 = por %p111, %p112
      %s114 = ssub.s32 %s17, %s24
      %p115 = scmp.eq.s32.totalorder %s114, 0
      %s117 = sadd.s32 %s116, 1
      %s118 = scalar_select %p115, %s116, %s117
      %p121 = pneg %p115
      %p122 = scmp.eq.s32.totalorder %s17, 1
      %p123 = por %p121, %p122
      %p124 = scmp.ne.s32.totalorder %s116, %s119
      %p125 = scmp.eq.s32.totalorder %s17, 0
      %p126 = por %p124, %p125
      %p127 = scmp.ne.s32.totalorder %s116, %s119
      %p128 = scmp.eq.s32.totalorder %s22, 1
      %p129 = por %p127, %p128
      %p130 = scmp.ne.s32.totalorder %s119, %s120
      %p131 = scmp.eq.s32.totalorder %s22, 0
      %p132 = por %p130, %p131
      %p133 = scmp.ne.s32.totalorder %s119, %s120
      %p134 = scmp.eq.s32.totalorder %s23, 1
      %p135 = por %p133, %p134
      %p137 = scmp.ne.s32.totalorder %s120, %s136
      %p138 = scmp.eq.s32.totalorder %s23, 0
      %p139 = por %p137, %p138
      %p140 = scmp.le.s32.totalorder 1, %s17
      %p141 = scmp.lt.s32.totalorder %s17, 3
      %p142 = pnand %p140, %p141
      %p143 = pneg %p142
      // Predicated region
      $region9: #{tpu_custom_call.1} parent=5 // pred_check
        _
      $region10: #{tpu_custom_call.1} parent=5 // pred_check_branch
        %145 = sbr.rel (%p142) target = $region12
      $region11: #{tpu_custom_call.1} parent=5 // pred_region
        %s146 = ssub.s32 %s17, 1
        // Predicated region
        $region13: #{tpu_custom_call.1} parent=11 // pred_check
          %p147 = pneg %p64
        $region14: #{tpu_custom_call.1} parent=11 // pred_check_branch
          %149 = sbr.rel (%p147) target = $region16
        $region15: #{tpu_custom_call.1} parent=11 // pred_region
          _
        $region16: #{tpu_custom_call.1} parent=11 // pred_fallthru
          _
        // Predicated region
        $region17: #{tpu_custom_call.1} parent=11 // pred_check
          %p150 = pneg %p85
        $region18: #{tpu_custom_call.1} parent=11 // pred_check_branch
          %152 = sbr.rel (%p150) target = $region20
        $region19: #{tpu_custom_call.1} parent=11 // pred_region
          _
        $region20: #{tpu_custom_call.1} parent=11 // pred_fallthru
          _
        // Predicated region
        $region21: #{tpu_custom_call.1} parent=11 // pred_check
          %p153 = pneg %p106
        $region22: #{tpu_custom_call.1} parent=11 // pred_check_branch
          %155 = sbr.rel (%p153) target = $region24
        $region23: #{tpu_custom_call.1} parent=11 // pred_region
          %s157 = ssub.s32 16, 16
          %158 = vsyncadd [#allocation5], %s157
          %s160 = sshll.u32 %s3, 4
          %s161 = int_to_ptr.vmem [resolvable:$true] %s160
          %163 = dma.vmem_to_smem %s161, 16, [#allocation6], [#allocation5]
        $region24: #{tpu_custom_call.1} parent=11 // pred_fallthru
          _
      $region12: #{tpu_custom_call.1} parent=5 // pred_fallthru
        _
      %p164 = scmp.lt.s32.totalorder %s17, 2
      // Predicated region
      $region25: #{tpu_custom_call.1} parent=5 // pred_check
        %p165 = pneg %p164
      $region26: #{tpu_custom_call.1} parent=5 // pred_check_branch
        %167 = sbr.rel (%p165) target = $region28
      $region27: #{tpu_custom_call.1} parent=5 // pred_region
        // Predicated region
        $region29: #{tpu_custom_call.1} parent=27 // pred_check
          %p168 = pneg %p37
        $region30: #{tpu_custom_call.1} parent=27 // pred_check_branch
          %170 = sbr.rel (%p168) target = $region32
        $region31: #{tpu_custom_call.1} parent=27 // pred_region
          %s171 = sand.u32 %s27, 1
          %s172 = scalar_lea.sflag [#allocation3], %s171
          %s173 = sand.u32 %s27, 1
          %s174 = smul.addr %s173, 8
          %s175 = scalar_lea.vmem [#allocation2], %s174
          %s177 = ssub.s32 128, 128
          %178 = vsyncadd %s172, %s177
          %s179 = smul.addr %s17, 2
          %s180 = smul.addr %s179, 64
          %s181 = scalar_lea.hbm %s0, %s180
          %s183 = sshll.u32 %s175, 4
          %s184 = int_to_ptr.vmem [resolvable:$true] %s183
          %186 = dma.hbm_to_vmem [thread:$0]  %s181, 128, %s184, %s172
        $region32: #{tpu_custom_call.1} parent=27 // pred_fallthru
          _
      $region28: #{tpu_custom_call.1} parent=5 // pred_fallthru
        _
      %p187 = scmp.le.s32.totalorder 1, %s17
      %p188 = scmp.lt.s32.totalorder %s17, 3
      %p189 = pnand %p187, %p188
      %p190 = pneg %p189
      // Predicated region
      $region33: #{tpu_custom_call.1} parent=5 // pred_check
        _
      $region34: #{tpu_custom_call.1} parent=5 // pred_check_branch
        %192 = sbr.rel (%p189) target = $region36
      $region35: #{tpu_custom_call.1} parent=5 // pred_region
        %s193 = ssub.s32 %s17, 1
        %s194 = sand.u32 %s30, 1
        %s195 = scalar_lea.sflag [#allocation3], %s194
        %s196 = sand.u32 %s30, 1
        %s197 = smul.addr %s196, 8
        %s198 = scalar_lea.vmem [#allocation2], %s197
        // Predicated region
        $region37: #{tpu_custom_call.1} parent=35 // pred_check
          %p199 = pneg %p43
        $region38: #{tpu_custom_call.1} parent=35 // pred_check_branch
          %201 = sbr.rel (%p199) target = $region40
        $region39: #{tpu_custom_call.1} parent=35 // pred_region
          %202 = dma.done %s195, 128
        $region40: #{tpu_custom_call.1} parent=35 // pred_fallthru
          _
        // Predicated region
        $region41: #{tpu_custom_call.1} parent=35 // pred_check
          %p203 = pneg %p106
        $region42: #{tpu_custom_call.1} parent=35 // pred_check_branch
          %205 = sbr.rel (%p203) target = $region44
        $region43: #{tpu_custom_call.1} parent=35 // pred_region
          %206 = dma.done [#allocation5], 16
        $region44: #{tpu_custom_call.1} parent=35 // pred_fallthru
          _
        %207 = sfence
        %s208 = sand.u32 %s30, 1
        %s209 = scalar_lea.sflag [#allocation3], %s208
        %s210 = sand.u32 %s30, 1
        %s211 = smul.addr %s210, 8
        %s212 = scalar_lea.vmem [#allocation2], %s211
        %p213 = pneg %p43
        %p214 = pneg %p40
        %p215 = pneg %p64
        %p216 = pneg %p61
        %p217 = pneg %p85
        %p218 = pneg %p82
        %p219 = pneg %p106
        %p220 = pneg %p103
        %p221 = pneg %p132
        %p222 = pneg %p129
        %s223 = sand.u32 %s119, 1
        %s224 = scalar_lea.sflag [#allocation4], %s223
        %s225 = sand.u32 %s119, 1
        %s226 = smul.addr %s225, 8
        %s227 = scalar_lea.vmem [#allocation7], %s226
        %v228 = vld [vmem:[%s198] sm:$0xff]
        %v230 = vcombine.high %v228, %v228
        %vm232 = vcmask 1043456
        %v233 = vsel %vm232, %v228, 0.0
        %v234 = vsel %vm232, %v230, 0.0
        %v235 = vadd.f32 %v233, %v234
        %236 = vadd.xlane.f32.xlu0 %v235
        %v237 = vpop.xlane.xlu0 %236
        %v238 = vrcp.pop 256.0
        %v239 = vmul.f32 %v237, %v238
        %v240 = vsel %vm232, %v228, -inf
        %v241 = vsel %vm232, %v230, -inf
        %v242 = vmax.f32 %v240, %v241
        %243 = vmax.xlane.f32.xlu0 %v242
        %v244 = vpop.xlane.xlu0 %243
        %v246 = vlaneseq
        %v247 = vand.u32 %v246, 127
        %v248 = vlaneseq
        %v249 = vshrl.u32 %v248, 7
        %v250 = vsub.s32 %v247, %v249
        %v251 = vrot.slane %v239, %v250
        %v254 = vlaneseq
        %v255 = vshrl.u32 %v254, 7
        %v256 = vsub.s32 %v247, %v255
        %v257 = vrot.slane %v244, %v256
        %vm259 = vcmask 1040384
        %v260 = vsel %vm259, %v251, %v257
        %v261 = vld [vmem:[%s1] sm:$0xf]
        %v262 = vld [vmem:[%s2] sm:$0x3]
        %v263 = vlaneseq
        %v264 = vshrl.u32 %v263, 7
        %v265 = vsub.s32 0, %v264
        %v266 = vrot.slane %v260, %v265
        %268 = vbcast.lane.b32.xlu0 %v266, 256
        %v269 = vpop.permute.xlu0 %268
        %v270 = vlaneseq
        %v271 = vshrl.u32 %v270, 7
        %v272 = vsub.s32 1, %v271
        %v273 = vrot.slane %v260, %v272
        %275 = vbcast.lane.b32.xlu0 %v273, 256
        %v276 = vpop.permute.xlu0 %275
        %v277 = vmul.f32 %v269, %v261
        %v278 = vmul.f32 %v276, %v261
        %vm279 = vcmask 11264
        %v280 = vsel %vm279, %v277, 0.0
        %v281 = vrot.slane %v280, 4
        %v282 = vadd.f32 %v280, %v281
        %v283 = vrot.slane %v282, 2
        %v284 = vadd.f32 %v282, %v283
        %v285 = vrot.slane %v284, 1
        %v286 = vadd.f32 %v284, %v285
        %v287 = vsel %vm279, %v278, 0.0
        %v288 = vrot.slane %v287, 4
        %v289 = vadd.f32 %v287, %v288
        %v290 = vrot.slane %v289, 2
        %v291 = vadd.f32 %v289, %v290
        %v292 = vrot.slane %v291, 1
        %v293 = vadd.f32 %v291, %v292
        %v294 = vmax.f32 %v286, 0.0
        %v295 = vmax.f32 %v293, 0.0
        %297 = vbcast.lane.b32.xlu0 %v294, 256
        %v298 = vpop.permute.xlu0 %297
        %300 = vbcast.lane.b32.xlu0 %v295, 256
        %v301 = vpop.permute.xlu0 %300
        %v302 = vmul.f32 %v298, %v262
        %v303 = vmul.f32 %v301, %v262
        %vm304 = vcmask 25600
        %v305 = vsel %vm304, %v302, 0.0
        %v306 = vrot.slane %v305, 4
        %v307 = vadd.f32 %v305, %v306
        %v308 = vrot.slane %v307, 2
        %v309 = vadd.f32 %v307, %v308
        %v310 = vrot.slane %v309, 1
        %v311 = vadd.f32 %v309, %v310
        %v312 = vsel %vm304, %v303, 0.0
        %v313 = vrot.slane %v312, 4
        %v314 = vadd.f32 %v312, %v313
        %v315 = vrot.slane %v314, 2
        %v316 = vadd.f32 %v314, %v315
        %v317 = vrot.slane %v316, 1
        %v318 = vadd.f32 %v316, %v317
        %v319 = vadd.f32 %v311, %v318
        %v320 = vxor.u32 %v319, 2147483648
        %v321 = vmul.f32 %v320, 1.442695
        %v322 = vpow.pop %v321
        %v323 = vadd.f32 %v322, 1.0
        %v324 = vrcp.pop %v323
        %v325 = vmul.f32 1.0, %v324
        %327 = vbcast.lane.b32.xlu0 %v325, 256
        %v328 = vpop.permute.xlu0 %327
        %v331 = vunpack.c.l.s4 839922192
        %v332 = vunpack.c.0.s8 %v331
        %v333 = vlaneseq
        %v334 = vshrl.u32 %v333, 7
        %v335 = vsub.s32 %v332, %v334
        %v336 = vrot.slane %v328, %v335
        %v338 = vmul.f32 %v228, %v336
        %v340 = vcombine.high %v338, %v338
        %v342 = vsel %vm232, %v338, 0.0
        %v343 = vrot.slane %v342, 4
        %v344 = vadd.f32 %v342, %v343
        %v345 = vrot.slane %v344, 2
        %v346 = vadd.f32 %v344, %v345
        %v347 = vrot.slane %v346, 1
        %v348 = vadd.f32 %v346, %v347
        %v349 = vsel %vm232, %v340, 0.0
        %v350 = vrot.slane %v349, 4
        %v351 = vadd.f32 %v349, %v350
        %v352 = vrot.slane %v351, 2
        %v353 = vadd.f32 %v351, %v352
        %v354 = vrot.slane %v353, 1
        %v355 = vadd.f32 %v353, %v354
        %v356 = vrcp.pop 4.0
        %v357 = vmul.f32 %v348, %v356
        %v358 = vmul.f32 %v355, %v356
        %v359 = vsel %vm232, %v338, -inf
        %v360 = vrot.slane %v359, 4
        %v361 = vmax.f32 %v359, %v360
        %v362 = vrot.slane %v361, 2
        %v363 = vmax.f32 %v361, %v362
        %v364 = vrot.slane %v363, 1
        %v365 = vmax.f32 %v363, %v364
        %v366 = vsel %vm232, %v340, -inf
        %v367 = vrot.slane %v366, 4
        %v368 = vmax.f32 %v366, %v367
        %v369 = vrot.slane %v368, 2
        %v370 = vmax.f32 %v368, %v369
        %v371 = vrot.slane %v370, 1
        %v372 = vmax.f32 %v370, %v371
        %v373 = vlaneseq
        %v374 = vshrl.u32 %v373, 7
        %v375 = vadd.s32 %v374, 8
        %v376 = vcombine.high %v374, 0
        %v378 = vunpack.c.l.s4 1983009808
        %v379 = vunpack.c.0.s8 %v378
        %v380 = vlaneseq
        %v381 = vshrl.u32 %v380, 7
        %v382 = vsub.s32 %v379, %v381
        %v383 = vrot.slane %v374, %v382
        %v385 = vunpack.c.l.s4 1983009808
        %v386 = vunpack.c.0.s8 %v385
        %v387 = vlaneseq
        %v388 = vshrl.u32 %v387, 7
        %v389 = vsub.s32 %v386, %v388
        %v390 = vrot.slane %v376, %v389
        %v391 = vcombine.high %v383, 0
        %v393 = vunpack.c.l.s4 1934713408
        %v394 = vunpack.c.0.s8 %v393
        %v395 = vlaneseq
        %v396 = vshrl.u32 %v395, 7
        %v397 = vsub.s32 %v394, %v396
        %v398 = vrot.slane %v383, %v397
        %v400 = vunpack.c.l.s4 1934713408
        %v401 = vunpack.c.0.s8 %v400
        %v402 = vlaneseq
        %v403 = vshrl.u32 %v402, 7
        %v404 = vsub.s32 %v401, %v403
        %v405 = vrot.slane %v391, %v404
        %v406 = vcombine.high %v390, 0
        %v408 = vunpack.c.l.s4 1934713408
        %v409 = vunpack.c.0.s8 %v408
        %v410 = vlaneseq
        %v411 = vshrl.u32 %v410, 7
        %v412 = vsub.s32 %v409, %v411
        %v413 = vrot.slane %v390, %v412
        %v415 = vunpack.c.l.s4 1934713408
        %v416 = vunpack.c.0.s8 %v415
        %v417 = vlaneseq
        %v418 = vshrl.u32 %v417, 7
        %v419 = vsub.s32 %v416, %v418
        %v420 = vrot.slane %v406, %v419
        %v421 = vcombine.high %v398, 0
        %v422 = vcombine.high %v405, 0
        %v423 = vcombine.high %v413, 0
        %v424 = vcombine.high %v420, 0
        %v425 = vcombine.high %v375, 0
        %v427 = vunpack.c.l.s4 1983009808
        %v428 = vunpack.c.0.s8 %v427
        %v429 = vlaneseq
        %v430 = vshrl.u32 %v429, 7
        %v431 = vsub.s32 %v428, %v430
        %v432 = vrot.slane %v375, %v431
        %v434 = vunpack.c.l.s4 1983009808
        %v435 = vunpack.c.0.s8 %v434
        %v436 = vlaneseq
        %v437 = vshrl.u32 %v436, 7
        %v438 = vsub.s32 %v435, %v437
        %v439 = vrot.slane %v425, %v438
        %v440 = vcombine.high %v432, 0
        %v442 = vunpack.c.l.s4 1934713408
        %v443 = vunpack.c.0.s8 %v442
        %v444 = vlaneseq
        %v445 = vshrl.u32 %v444, 7
        %v446 = vsub.s32 %v443, %v445
        %v447 = vrot.slane %v432, %v446
        %v449 = vunpack.c.l.s4 1934713408
        %v450 = vunpack.c.0.s8 %v449
        %v451 = vlaneseq
        %v452 = vshrl.u32 %v451, 7
        %v453 = vsub.s32 %v450, %v452
        %v454 = vrot.slane %v440, %v453
        %v455 = vcombine.high %v439, 0
        %v457 = vunpack.c.l.s4 1934713408
        %v458 = vunpack.c.0.s8 %v457
        %v459 = vlaneseq
        %v460 = vshrl.u32 %v459, 7
        %v461 = vsub.s32 %v458, %v460
        %v462 = vrot.slane %v439, %v461
        %v464 = vunpack.c.l.s4 1934713408
        %v465 = vunpack.c.0.s8 %v464
        %v466 = vlaneseq
        %v467 = vshrl.u32 %v466, 7
        %v468 = vsub.s32 %v465, %v467
        %v469 = vrot.slane %v455, %v468
        %v470 = vcombine.high %v447, 0
        %v471 = vcombine.high %v454, 0
        %v472 = vcombine.high %v462, 0
        %v473 = vcombine.high %v469, 0
        %474 = vrot.lane.b32.xlu0 %v421, 16
        %v475 = vpop.permute.xlu0 %474
        %476 = vrot.lane.b32.xlu0 %v405, 32
        %v477 = vpop.permute.xlu0 %476
        %478 = vrot.lane.b32.xlu0 %v422, 48
        %v479 = vpop.permute.xlu0 %478
        %480 = vrot.lane.b32.xlu0 %v413, 64
        %v481 = vpop.permute.xlu0 %480
        %482 = vrot.lane.b32.xlu0 %v423, 80
        %v483 = vpop.permute.xlu0 %482
        %484 = vrot.lane.b32.xlu0 %v420, 96
        %v485 = vpop.permute.xlu0 %484
        %486 = vrot.lane.b32.xlu0 %v424, 112
        %v487 = vpop.permute.xlu0 %486
        %488 = vrot.lane.b32.xlu0 %v470, 16
        %v489 = vpop.permute.xlu0 %488
        %490 = vrot.lane.b32.xlu0 %v454, 32
        %v491 = vpop.permute.xlu0 %490
        %492 = vrot.lane.b32.xlu0 %v471, 48
        %v493 = vpop.permute.xlu0 %492
        %494 = vrot.lane.b32.xlu0 %v462, 64
        %v495 = vpop.permute.xlu0 %494
        %496 = vrot.lane.b32.xlu0 %v472, 80
        %v497 = vpop.permute.xlu0 %496
        %498 = vrot.lane.b32.xlu0 %v469, 96
        %v499 = vpop.permute.xlu0 %498
        %500 = vrot.lane.b32.xlu0 %v473, 112
        %v501 = vpop.permute.xlu0 %500
        %vm502 = vcmask 130048
        %v503 = vsel %vm502, %v398, %v475
        %vm504 = vcmask 261120
        %v505 = vsel %vm504, %v503, %v477
        %vm506 = vcmask 392192
        %v507 = vsel %vm506, %v505, %v479
        %vm508 = vcmask 523264
        %v509 = vsel %vm508, %v507, %v481
        %vm510 = vcmask 654336
        %v511 = vsel %vm510, %v509, %v483
        %vm512 = vcmask 785408
        %v513 = vsel %vm512, %v511, %v485
        %vm514 = vcmask 916480
        %v515 = vsel %vm514, %v513, %v487
        %v516 = vsel %vm502, %v447, %v489
        %v517 = vsel %vm504, %v516, %v491
        %v518 = vsel %vm506, %v517, %v493
        %v519 = vsel %vm508, %v518, %v495
        %v520 = vsel %vm510, %v519, %v497
        %v521 = vsel %vm512, %v520, %v499
        %v522 = vsel %vm514, %v521, %v501
        %v523 = vcombine.high %v247, 0
        %v525 = vunpack.c.l.s4 1983009808
        %v526 = vunpack.c.0.s8 %v525
        %v527 = vlaneseq
        %v528 = vshrl.u32 %v527, 7
        %v529 = vsub.s32 %v526, %v528
        %v530 = vrot.slane %v247, %v529
        %v532 = vunpack.c.l.s4 1983009808
        %v533 = vunpack.c.0.s8 %v532
        %v534 = vlaneseq
        %v535 = vshrl.u32 %v534, 7
        %v536 = vsub.s32 %v533, %v535
        %v537 = vrot.slane %v523, %v536
        %v538 = vcombine.high %v530, 0
        %v540 = vunpack.c.l.s4 1934713408
        %v541 = vunpack.c.0.s8 %v540
        %v542 = vlaneseq
        %v543 = vshrl.u32 %v542, 7
        %v544 = vsub.s32 %v541, %v543
        %v545 = vrot.slane %v530, %v544
        %v547 = vunpack.c.l.s4 1934713408
        %v548 = vunpack.c.0.s8 %v547
        %v549 = vlaneseq
        %v550 = vshrl.u32 %v549, 7
        %v551 = vsub.s32 %v548, %v550
        %v552 = vrot.slane %v538, %v551
        %v553 = vcombine.high %v537, 0
        %v555 = vunpack.c.l.s4 1934713408
        %v556 = vunpack.c.0.s8 %v555
        %v557 = vlaneseq
        %v558 = vshrl.u32 %v557, 7
        %v559 = vsub.s32 %v556, %v558
        %v560 = vrot.slane %v537, %v559
        %v562 = vunpack.c.l.s4 1934713408
        %v563 = vunpack.c.0.s8 %v562
        %v564 = vlaneseq
        %v565 = vshrl.u32 %v564, 7
        %v566 = vsub.s32 %v563, %v565
        %v567 = vrot.slane %v553, %v566
        %v568 = vcombine.high %v545, 0
        %v569 = vcombine.high %v552, 0
        %v570 = vcombine.high %v560, 0
        %v571 = vcombine.high %v567, 0
        %572 = vrot.lane.b32.xlu0 %v568, 16
        %v573 = vpop.permute.xlu0 %572
        %574 = vrot.lane.b32.xlu0 %v552, 32
        %v575 = vpop.permute.xlu0 %574
        %576 = vrot.lane.b32.xlu0 %v569, 48
        %v577 = vpop.permute.xlu0 %576
        %578 = vrot.lane.b32.xlu0 %v560, 64
        %v579 = vpop.permute.xlu0 %578
        %580 = vrot.lane.b32.xlu0 %v570, 80
        %v581 = vpop.permute.xlu0 %580
        %582 = vrot.lane.b32.xlu0 %v567, 96
        %v583 = vpop.permute.xlu0 %582
        %584 = vrot.lane.b32.xlu0 %v571, 112
        %v585 = vpop.permute.xlu0 %584
        %v586 = vsel %vm502, %v545, %v573
        %v587 = vsel %vm504, %v586, %v575
        %v588 = vsel %vm506, %v587, %v577
        %v589 = vsel %vm508, %v588, %v579
        %v590 = vsel %vm510, %v589, %v581
        %v591 = vsel %vm512, %v590, %v583
        %v592 = vsel %vm514, %v591, %v585
        %594 = vrot.lane.b32.xlu0 %v358, 17
        %v595 = vpop.permute.xlu0 %594
        %598 = vrot.lane.b32.xlu0 %v357, 17
        %v599 = vpop.permute.xlu0 %598
        %vm600 = vcmask 138240
        %v601 = vsel %vm600, %v599, %v595
        %v604 = vsel %vm600, %v595, %v599
        %606 = vrot.lane.b32.xlu0 %v372, 17
        %v607 = vpop.permute.xlu0 %606
        %610 = vrot.lane.b32.xlu0 %v365, 17
        %v611 = vpop.permute.xlu0 %610
        %v612 = vsel %vm600, %v611, %v607
        %v615 = vsel %vm600, %v607, %v611
        %s616 = sld [smem:[#allocation6]]
        %s617 = sld [smem:[#allocation6 + $0x9]]
        %v618 = vadd.s32 %v515, 4294967295
        %v619 = vadd.s32 %v522, 4294967295
        %vm620 = vcmp.ge.s32.totalorder %v618, 0
        %vm621 = vcmp.ge.s32.totalorder %v619, 0
        %vm622 = vcmp.lt.s32.totalorder %v618, 16
        %vm623 = vcmp.lt.s32.totalorder %v619, 16
        %vm624 = vmand %vm620, %vm622
        %vm625 = vmand %vm621, %vm623
        %v626 = vadd.s32 %v592, 4294967295
        %vm627 = vcmp.ge.s32.totalorder %v626, 0
        %vm628 = vmand %vm624, %vm627
        %vm629 = vmand %vm625, %vm627
        %vm630 = vcmp.lt.s32.totalorder %v626, 16
        %vm631 = vmand %vm628, %vm630
        %vm632 = vmand %vm629, %vm630
        %v633 = vstv %s616
        %v634 = vmul.f32 %v633, %v604
        %v635 = vmul.f32 %v633, %v601
        %v636 = vstv %s617
        %v637 = vmul.f32 %v636, %v615
        %v638 = vmul.f32 %v636, %v612
        %v639 = vadd.f32 %v634, %v637
        %v640 = vadd.f32 %v635, %v638
        %v641 = vsel %vm631, %v639, 0.0
        %v642 = vsel %vm632, %v640, 0.0
        %v643 = vadd.f32 %v641, 0.0
        %v644 = vadd.f32 %v642, 0.0
        %645 = vrot.lane.b32.xlu0 %v358, 16
        %v646 = vpop.permute.xlu0 %645
        %648 = vrot.lane.b32.xlu0 %v357, 16
        %v649 = vpop.permute.xlu0 %648
        %v650 = vsel %vm502, %v649, %v646
        %v653 = vsel %vm502, %v646, %v649
        %654 = vrot.lane.b32.xlu0 %v372, 16
        %v655 = vpop.permute.xlu0 %654
        %657 = vrot.lane.b32.xlu0 %v365, 16
        %v658 = vpop.permute.xlu0 %657
        %v659 = vsel %vm502, %v658, %v655
        %v662 = vsel %vm502, %v655, %v658
        %s663 = sld [smem:[#allocation6 + $0x1]]
        %s664 = sld [smem:[#allocation6 + $0xa]]
        %vm665 = vcmp.ge.s32.totalorder %v592, 0
        %vm666 = vmand %vm624, %vm665
        %vm667 = vmand %vm625, %vm665
        %vm668 = vcmp.lt.s32.totalorder %v592, 16
        %vm669 = vmand %vm666, %vm668
        %vm670 = vmand %vm667, %vm668
        %v671 = vstv %s663
        %v672 = vmul.f32 %v671, %v653
        %v673 = vmul.f32 %v671, %v650
        %v674 = vstv %s664
        %v675 = vmul.f32 %v674, %v662
        %v676 = vmul.f32 %v674, %v659
        %v677 = vadd.f32 %v672, %v675
        %v678 = vadd.f32 %v673, %v676
        %v679 = vsel %vm669, %v677, 0.0
        %v680 = vsel %vm670, %v678, 0.0
        %v681 = vadd.f32 %v643, %v679
        %v682 = vadd.f32 %v644, %v680
        %683 = vrot.lane.b32.xlu0 %v358, 15
        %v684 = vpop.permute.xlu0 %683
        %686 = vrot.lane.b32.xlu0 %v357, 15
        %v687 = vpop.permute.xlu0 %686
        %vm688 = vcmask 121856
        %v689 = vsel %vm688, %v687, %v684
        %v692 = vsel %vm688, %v684, %v687
        %693 = vrot.lane.b32.xlu0 %v372, 15
        %v694 = vpop.permute.xlu0 %693
        %696 = vrot.lane.b32.xlu0 %v365, 15
        %v697 = vpop.permute.xlu0 %696
        %v698 = vsel %vm688, %v697, %v694
        %v701 = vsel %vm688, %v694, %v697
        %s702 = sld [smem:[#allocation6 + $0x2]]
        %s703 = sld [smem:[#allocation6 + $0xb]]
        %v704 = vadd.s32 %v592, 1
        %vm705 = vcmp.ge.s32.totalorder %v704, 0
        %vm706 = vmand %vm624, %vm705
        %vm707 = vmand %vm625, %vm705
        %vm708 = vcmp.lt.s32.totalorder %v704, 16
        %vm709 = vmand %vm706, %vm708
        %vm710 = vmand %vm707, %vm708
        %v711 = vstv %s702
        %v712 = vmul.f32 %v711, %v692
        %v713 = vmul.f32 %v711, %v689
        %v714 = vstv %s703
        %v715 = vmul.f32 %v714, %v701
        %v716 = vmul.f32 %v714, %v698
        %v717 = vadd.f32 %v712, %v715
        %v718 = vadd.f32 %v713, %v716
        %v719 = vsel %vm709, %v717, 0.0
        %v720 = vsel %vm710, %v718, 0.0
        %v721 = vadd.f32 %v681, %v719
        %v722 = vadd.f32 %v682, %v720
        %723 = vrot.lane.b32.xlu0 %v358, 1
        %v724 = vpop.permute.xlu0 %723
        %726 = vrot.lane.b32.xlu0 %v357, 1
        %v727 = vpop.permute.xlu0 %726
        %vm728 = vcmask 7168
        %v729 = vsel %vm728, %v727, %v724
        %v732 = vsel %vm728, %v724, %v727
        %733 = vrot.lane.b32.xlu0 %v372, 1
        %v734 = vpop.permute.xlu0 %733
        %736 = vrot.lane.b32.xlu0 %v365, 1
        %v737 = vpop.permute.xlu0 %736
        %v738 = vsel %vm728, %v737, %v734
        %v741 = vsel %vm728, %v734, %v737
        %s742 = sld [smem:[#allocation6 + $0x3]]
        %s743 = sld [smem:[#allocation6 + $0xc]]
        %vm744 = vcmp.ge.s32.totalorder %v515, 0
        %vm745 = vcmp.ge.s32.totalorder %v522, 0
        %vm746 = vcmp.lt.s32.totalorder %v515, 16
        %vm747 = vcmp.lt.s32.totalorder %v522, 16
        %vm748 = vmand %vm744, %vm746
        %vm749 = vmand %vm745, %vm747
        %vm750 = vmand %vm748, %vm627
        %vm751 = vmand %vm749, %vm627
        %vm752 = vmand %vm750, %vm630
        %vm753 = vmand %vm751, %vm630
        %v754 = vstv %s742
        %v755 = vmul.f32 %v754, %v732
        %v756 = vmul.f32 %v754, %v729
        %v757 = vstv %s743
        %v758 = vmul.f32 %v757, %v741
        %v759 = vmul.f32 %v757, %v738
        %v760 = vadd.f32 %v755, %v758
        %v761 = vadd.f32 %v756, %v759
        %v762 = vsel %vm752, %v760, 0.0
        %v763 = vsel %vm753, %v761, 0.0
        %v764 = vadd.f32 %v721, %v762
        %v765 = vadd.f32 %v722, %v763
        %s766 = sld [smem:[#allocation6 + $0x4]]
        %s767 = sld [smem:[#allocation6 + $0xd]]
        %vm768 = vmand %vm748, %vm665
        %vm769 = vmand %vm749, %vm665
        %vm770 = vmand %vm768, %vm668
        %vm771 = vmand %vm769, %vm668
        %v772 = vstv %s766
        %v773 = vmul.f32 %v772, %v357
        %v774 = vmul.f32 %v772, %v358
        %v775 = vstv %s767
        %v776 = vmul.f32 %v775, %v365
        %v777 = vmul.f32 %v775, %v372
        %v778 = vadd.f32 %v773, %v776
        %v779 = vadd.f32 %v774, %v777
        %v780 = vsel %vm770, %v778, 0.0
        %v781 = vsel %vm771, %v779, 0.0
        %v782 = vadd.f32 %v764, %v780
        %v783 = vadd.f32 %v765, %v781
        %784 = vrot.lane.b32.xlu0 %v357, 127
        %v785 = vpop.permute.xlu0 %784
        %786 = vrot.lane.b32.xlu0 %v358, 127
        %v787 = vpop.permute.xlu0 %786
        %vm788 = vcmask 1039360
        %v789 = vsel %vm788, %v785, %v787
        %v793 = vsel %vm788, %v787, %v785
        %794 = vrot.lane.b32.xlu0 %v365, 127
        %v795 = vpop.permute.xlu0 %794
        %796 = vrot.lane.b32.xlu0 %v372, 127
        %v797 = vpop.permute.xlu0 %796
        %v798 = vsel %vm788, %v795, %v797
        %v802 = vsel %vm788, %v797, %v795
        %s803 = sld [smem:[#allocation6 + $0x5]]
        %s804 = sld [smem:[#allocation6 + $0xe]]
        %vm805 = vmand %vm748, %vm705
        %vm806 = vmand %vm749, %vm705
        %vm807 = vmand %vm805, %vm708
        %vm808 = vmand %vm806, %vm708
        %v809 = vstv %s803
        %v810 = vmul.f32 %v809, %v789
        %v811 = vmul.f32 %v809, %v793
        %v812 = vstv %s804
        %v813 = vmul.f32 %v812, %v798
        %v814 = vmul.f32 %v812, %v802
        %v815 = vadd.f32 %v810, %v813
        %v816 = vadd.f32 %v811, %v814
        %v817 = vsel %vm807, %v815, 0.0
        %v818 = vsel %vm808, %v816, 0.0
        %v819 = vadd.f32 %v782, %v817
        %v820 = vadd.f32 %v783, %v818
        %821 = vrot.lane.b32.xlu0 %v357, 113
        %v822 = vpop.permute.xlu0 %821
        %823 = vrot.lane.b32.xlu0 %v358, 113
        %v824 = vpop.permute.xlu0 %823
        %vm825 = vcmask 924672
        %v826 = vsel %vm825, %v822, %v824
        %v830 = vsel %vm825, %v824, %v822
        %831 = vrot.lane.b32.xlu0 %v365, 113
        %v832 = vpop.permute.xlu0 %831
        %833 = vrot.lane.b32.xlu0 %v372, 113
        %v834 = vpop.permute.xlu0 %833
        %v835 = vsel %vm825, %v832, %v834
        %v839 = vsel %vm825, %v834, %v832
        %s840 = sld [smem:[#allocation6 + $0x6]]
        %s841 = sld [smem:[#allocation6 + $0xf]]
        %v842 = vadd.s32 %v515, 1
        %v843 = vadd.s32 %v522, 1
        %vm844 = vcmp.ge.s32.totalorder %v842, 0
        %vm845 = vcmp.ge.s32.totalorder %v843, 0
        %vm846 = vcmp.lt.s32.totalorder %v842, 16
        %vm847 = vcmp.lt.s32.totalorder %v843, 16
        %vm848 = vmand %vm844, %vm846
        %vm849 = vmand %vm845, %vm847
        %vm850 = vmand %vm848, %vm627
        %vm851 = vmand %vm849, %vm627
        %vm852 = vmand %vm850, %vm630
        %vm853 = vmand %vm851, %vm630
        %v854 = vstv %s840
        %v855 = vmul.f32 %v854, %v826
        %v856 = vmul.f32 %v854, %v830
        %v857 = vstv %s841
        %v858 = vmul.f32 %v857, %v835
        %v859 = vmul.f32 %v857, %v839
        %v860 = vadd.f32 %v855, %v858
        %v861 = vadd.f32 %v856, %v859
        %v862 = vsel %vm852, %v860, 0.0
        %v863 = vsel %vm853, %v861, 0.0
        %v864 = vadd.f32 %v819, %v862
        %v865 = vadd.f32 %v820, %v863
        %866 = vrot.lane.b32.xlu0 %v357, 112
        %v867 = vpop.permute.xlu0 %866
        %868 = vrot.lane.b32.xlu0 %v358, 112
        %v869 = vpop.permute.xlu0 %868
        %v870 = vsel %vm514, %v867, %v869
        %v874 = vsel %vm514, %v869, %v867
        %875 = vrot.lane.b32.xlu0 %v365, 112
        %v876 = vpop.permute.xlu0 %875
        %877 = vrot.lane.b32.xlu0 %v372, 112
        %v878 = vpop.permute.xlu0 %877
        %v879 = vsel %vm514, %v876, %v878
        %v883 = vsel %vm514, %v878, %v876
        %s884 = sld [smem:[#allocation6 + $0x7]]
        %s885 = sld [smem:[#allocation6 + $0x10]]
        %vm886 = vmand %vm848, %vm665
        %vm887 = vmand %vm849, %vm665
        %vm888 = vmand %vm886, %vm668
        %vm889 = vmand %vm887, %vm668
        %v890 = vstv %s884
        %v891 = vmul.f32 %v890, %v870
        %v892 = vmul.f32 %v890, %v874
        %v893 = vstv %s885
        %v894 = vmul.f32 %v893, %v879
        %v895 = vmul.f32 %v893, %v883
        %v896 = vadd.f32 %v891, %v894
        %v897 = vadd.f32 %v892, %v895
        %v898 = vsel %vm888, %v896, 0.0
        %v899 = vsel %vm889, %v897, 0.0
        %v900 = vadd.f32 %v864, %v898
        %v901 = vadd.f32 %v865, %v899
        %902 = vrot.lane.b32.xlu0 %v357, 111
        %v903 = vpop.permute.xlu0 %902
        %904 = vrot.lane.b32.xlu0 %v358, 111
        %v905 = vpop.permute.xlu0 %904
        %vm906 = vcmask 908288
        %v907 = vsel %vm906, %v903, %v905
        %v911 = vsel %vm906, %v905, %v903
        %912 = vrot.lane.b32.xlu0 %v365, 111
        %v913 = vpop.permute.xlu0 %912
        %914 = vrot.lane.b32.xlu0 %v372, 111
        %v915 = vpop.permute.xlu0 %914
        %v916 = vsel %vm906, %v913, %v915
        %v920 = vsel %vm906, %v915, %v913
        %s921 = sld [smem:[#allocation6 + $0x8]]
        %s922 = sld [smem:[#allocation6 + $0x11]]
        %vm923 = vmand %vm848, %vm705
        %vm924 = vmand %vm849, %vm705
        %vm925 = vmand %vm923, %vm708
        %vm926 = vmand %vm924, %vm708
        %v927 = vstv %s921
        %v928 = vmul.f32 %v927, %v907
        %v929 = vmul.f32 %v927, %v911
        %v930 = vstv %s922
        %v931 = vmul.f32 %v930, %v916
        %v932 = vmul.f32 %v930, %v920
        %v933 = vadd.f32 %v928, %v931
        %v934 = vadd.f32 %v929, %v932
        %v935 = vsel %vm925, %v933, 0.0
        %v936 = vsel %vm926, %v934, 0.0
        %v937 = vadd.f32 %v900, %v935
        %v938 = vadd.f32 %v901, %v936
        %v939 = vxor.u32 %v937, 2147483648
        %v940 = vxor.u32 %v938, 2147483648
        %v941 = vmul.f32 %v939, 1.442695
        %v942 = vpow.pop %v941
        %v943 = vmul.f32 %v940, 1.442695
        %v944 = vpow.pop %v943
        %v945 = vadd.f32 %v942, 1.0
        %v946 = vadd.f32 %v944, 1.0
        %v947 = vrcp.pop %v945
        %v948 = vmul.f32 1.0, %v947
        %v949 = vrcp.pop %v946
        %v950 = vmul.f32 1.0, %v949
        %v951 = vlaneseq
        %v952 = vshrl.u32 %v951, 7
        %v953 = vsub.s32 0, %v952
        %v954 = vrot.slane %v948, %v953
        %v955 = vlaneseq
        %v956 = vshrl.u32 %v955, 7
        %v957 = vsub.s32 0, %v956
        %v958 = vrot.slane %v950, %v957
        %v961 = vcombine.low %v954, %v958
        %v963 = vmul.f32 %v338, %v961
        %964 = vst [vmem:[%s227] sm:$0xff] %v963
        %s965 = sand.u32 %s119, 1
        %s966 = scalar_lea.sflag [#allocation4], %s965
        %s967 = sand.u32 %s119, 1
        %s968 = smul.addr %s967, 8
        %s969 = scalar_lea.vmem [#allocation7], %s968
        // Predicated region
        $region45: #{tpu_custom_call.1} parent=35 // pred_check
          %p970 = pneg %p129
        $region46: #{tpu_custom_call.1} parent=35 // pred_check_branch
          %972 = sbr.rel (%p970) target = $region48
        $region47: #{tpu_custom_call.1} parent=35 // pred_region
          %s974 = ssub.s32 128, 128
          %975 = vsyncadd %s966, %s974
          %s976 = smul.addr %s22, 2
          %s977 = smul.addr %s976, 64
          %s978 = scalar_lea.hbm %s4, %s977
          %s980 = sshll.u32 %s969, 4
          %s981 = int_to_ptr.vmem [resolvable:$true] %s980
          %983 = dma.vmem_to_hbm [thread:$0]  %s981, 128, %s978, %s966
        $region48: #{tpu_custom_call.1} parent=35 // pred_fallthru
          _
      $region36: #{tpu_custom_call.1} parent=5 // pred_fallthru
        _
      %p984 = scmp.le.s32.totalorder 2, %s17
      // Predicated region
      $region49: #{tpu_custom_call.1} parent=5 // pred_check
        %p985 = pneg %p984
      $region50: #{tpu_custom_call.1} parent=5 // pred_check_branch
        %987 = sbr.rel (%p985) target = $region52
      $region51: #{tpu_custom_call.1} parent=5 // pred_region
        %s988 = ssub.s32 %s17, 2
        // Predicated region
        $region53: #{tpu_custom_call.1} parent=51 // pred_check
          %p989 = pneg %p135
        $region54: #{tpu_custom_call.1} parent=51 // pred_check_branch
          %991 = sbr.rel (%p989) target = $region56
        $region55: #{tpu_custom_call.1} parent=51 // pred_region
          %s992 = sand.u32 %s120, 1
          %s993 = scalar_lea.sflag [#allocation4], %s992
          %s994 = sand.u32 %s120, 1
          %s995 = smul.addr %s994, 8
          %s996 = scalar_lea.vmem [#allocation7], %s995
          %997 = dma.done %s993, 128
        $region56: #{tpu_custom_call.1} parent=51 // pred_fallthru
          _
      $region52: #{tpu_custom_call.1} parent=5 // pred_fallthru
        _
    $region6: #{tpu_custom_call.1} parent=1 // loop_footer
      %s21 = sadd.s32 1, %s17
    $region7: #{tpu_custom_call.1} parent=1 // loop_footer_branch
      %16 = sbr.rel target = $region3
    $region8: #{tpu_custom_call.1} parent=1 // loop_exit
      _
    %998 = vsyncpa [#allocation3], 1
    %s999 = scalar_lea.sflag [#allocation3], 1
    %1000 = vsyncpa %s999, 1
    %1001 = vsyncpa [#allocation4], 1
    %s1002 = scalar_lea.sflag [#allocation4], 1
    %1003 = vsyncpa %s1002, 1
    %1004 = vsyncpa [#allocation5], 1
    %s1005 = scalar_lea.sflag [#allocation5], 1
    %1006 = vsyncpa %s1005, 1

</llo_original>
